<compile_context>
chip_gen: v7x
topology: tpu7x:2x2x1
jax: 0.10.0
libtpu: 0.0.40
codegen_flags: <defaults>
</compile_context>

<pallas_src>
import functools

import numpy as np
import jax
import jax.numpy as jnp
from jax.experimental import pallas as pl
from jax.experimental.pallas import tpu as pltpu

KSIZE = 11            # kernel_size
VAR = 0.01            # kernel_variance
NUM_OCT = 4           # num_octaves
SCALING = 10          # octave_scaling
N_OUT = NUM_OCT + 1   # Conv2d(1, num_octaves + 1, ...)
PAD = KSIZE // 2      # padding='same' for odd, stride-1 kernel
PRUNE_EPS = 1e-7      # drop 1D taps below this normalized weight


def generate_gaussian_kernels_2d(size=KSIZE, var=VAR, scales=N_OUT, scaling=SCALING):
    """Deterministic fp32 replica of GaussianPyramid.generateGaussianKernels."""
    coords = np.arange(-(size // 2), size // 2 + 1, dtype=np.float32)
    yy, xx = np.meshgrid(coords, coords, indexing="ij")   # torch.meshgrid default 'ij'
    r2 = yy ** 2 + xx ** 2
    ks = np.stack([np.exp(-r2 / (2.0 * var * (scaling ** i))) for i in range(scales)], 0)
    ks = ks / ks.sum(axis=(1, 2), keepdims=True)
    return ks.astype(np.float32)                          # (N_OUT, K, K)


def gaussian_taps_1d(size=KSIZE, var=VAR, scales=N_OUT, scaling=SCALING, eps=PRUNE_EPS):
    """Separable 1D factor of each scale's kernel, tiny taps pruned.

    exp(-(x^2+y^2)/2s^2) factorizes exactly, and normalizing the 2D kernel by
    its sum equals the outer product of the sum-normalized 1D kernels.
    Returns, per scale, a list of (tap_offset, weight) python constants.
    """
    coords = np.arange(-(size // 2), size // 2 + 1, dtype=np.float64)
    per_scale = []
    for i in range(scales):
        k = np.exp(-coords ** 2 / (2.0 * var * (scaling ** i)))
        k = k / k.sum()
        per_scale.append([(int(j), float(k[j])) for j in range(size) if k[j] > eps])
    return per_scale


def _pyramid_kernel(x_ref, o_ref, *, taps, H, W):
    # x_ref: (B_TILE, Hp, Wp) f32 in VMEM (reflect-padded images)
    # o_ref: (B_TILE, N_OUT, H, W) f32 in VMEM
    xpad = x_ref[...]                                     # single VMEM load of the tile

    for o, scale_taps in enumerate(taps):                 # one scale at a time
        offs = [t[0] for t in scale_taps]
        i_lo, i_hi = min(offs), max(offs)
        rows_h = (i_hi - i_lo) + H                        # rows the column pass needs

        # Row (lane-direction) pass along W.
        row = None
        for j, w in scale_taps:
            term = xpad[:, i_lo:i_lo + rows_h, j:j + W] * w
            row = term if row is None else row + term

        # Column (sublane-direction) pass along H.
        col = None
        for i, w in scale_taps:
            term = row[:, (i - i_lo):(i - i_lo) + H, :] * w
            col = term if col is None else col + term

        # Store this scale immediately; accumulators die before the next scale.
        o_ref[:, o, :, :] = col


def gaussian_pyramid(x, *, b_tile=None):
    """x: (N, 1, H, W) float32  ->  (N, N_OUT, H, W) float32."""
    N, C, H, W = x.shape
    assert C == 1, "GaussianPyramid expects a single input channel"
    assert H > PAD and W > PAD, "reflect padding with PAD=5 needs H, W > 5"

    # torch padding_mode='reflect' == jnp.pad mode='reflect' (edge not repeated)
    xpad = jnp.pad(x[:, 0].astype(jnp.float32),
                   ((0, 0), (PAD, PAD), (PAD, PAD)), mode="reflect")
    Hp, Wp = H + 2 * PAD, W + 2 * PAD

    if b_tile is None:
        # Largest batch tile whose double-buffered input+output stays well in
        # VMEM, capped at 64 to keep block granularity / vreg pressure sane.
        per_img = 2 * (Hp * Wp + N_OUT * H * W) * 4
        b_tile = int(max(1, min(N, 64, (24 << 20) // max(per_img, 1))))
        while N % b_tile:
            b_tile -= 1
    # TODO(synk): for very large single images (padded image + 5-scale output
    # not fitting VMEM, e.g. ~1k x 1k on v7x's 64 MiB), add row tiling with a
    # 2*PAD halo via memory_space=pl.ANY + manual make_async_copy.

    taps = gaussian_taps_1d()
    kernel = functools.partial(_pyramid_kernel, taps=taps, H=H, W=W)

    return pl.pallas_call(
        kernel,
        out_shape=jax.ShapeDtypeStruct((N, N_OUT, H, W), jnp.float32),
        grid_spec=pltpu.PrefetchScalarGridSpec(
            num_scalar_prefetch=0,
            grid=(N // b_tile,),
            in_specs=[pl.BlockSpec((b_tile, Hp, Wp), lambda n: (n, 0, 0))],
            out_specs=pl.BlockSpec((b_tile, N_OUT, H, W), lambda n: (n, 0, 0, 0)),
        ),
        compiler_params=pltpu.CompilerParams(
            dimension_semantics=("parallel",),   # independent batch tiles (2 TCs on v7x)
            vmem_limit_bytes=48 << 20,           # > 32 MiB scoped default, < v7x physical
        ),
    )(xpad)


if __name__ == "__main__":
    key = jax.random.PRNGKey(0)
    x = jax.random.normal(key, (2, 1, 16, 16), dtype=jnp.float32)

    out = jax.block_until_ready(gaussian_pyramid(x))
    assert out.shape == (2, N_OUT, 16, 16) and out.dtype == jnp.float32

    # Pure-numpy reference: full (non-separable, unpruned) fp32 11x11 kernels on
    # the same reflect-padded input.  Identical semantics to torch.nn.Conv2d
    # (cross-correlation; the Gaussian taps are symmetric so conv == xcorr).
    xnp = np.asarray(x)[:, 0]
    xpad_np = np.pad(xnp, ((0, 0), (PAD, PAD), (PAD, PAD)), mode="reflect")
    k2d = generate_gaussian_kernels_2d()
    Nb, H, W = xnp.shape
    ref = np.zeros((Nb, N_OUT, H, W), np.float32)
    for o in range(N_OUT):
        for ki in range(KSIZE):
            for kj in range(KSIZE):
                ref[:, o] += k2d[o, ki, kj] * xpad_np[:, ki:ki + H, kj:kj + W]

    np.testing.assert_allclose(np.asarray(out), ref, atol=1e-5, rtol=1e-5)
    print("KERNEL_OK")
</pallas_src>

<mosaic_0001>
module attributes {stable_mosaic.version = 11 : i64} {
  func.func @_pyramid_kernel(%arg0: i32, %arg1: memref<2x26x26xf32, #tpu.memory_space<vmem>>, %arg2: memref<2x5x16x16xf32, #tpu.memory_space<vmem>>) attributes {dimension_semantics = [#tpu.dimension_semantics<parallel>], iteration_bounds = array<i64: 1>, scalar_prefetch = 0 : i64, scratch_operands = 0 : i64, tpu.core_type = #tpu.core_type<tc>, window_params = [{transform_indices = @transform_0, window_bounds = array<i64: 2, 26, 26>}, {transform_indices = @transform_1, window_bounds = array<i64: 2, 5, 16, 16>}]} {
    %c0 = arith.constant 0 : index
    %c0_0 = arith.constant 0 : index
    %c0_1 = arith.constant 0 : index
    %0 = vector.load %arg1[%c0, %c0_0, %c0_1] : memref<2x26x26xf32, #tpu.memory_space<vmem>>, vector<2x26x26xf32>
    %1 = vector.extract_strided_slice %0 {offsets = [0, 5, 5], sizes = [2, 16, 16], strides = [1, 1, 1]} : vector<2x26x26xf32> to vector<2x16x16xf32>
    %cst = arith.constant 1.000000e+00 : f32
    %2 = vector.broadcast %cst : f32 to vector<2x16x16xf32>
    %3 = arith.mulf %1, %2 : vector<2x16x16xf32>
    %cst_2 = arith.constant 1.000000e+00 : f32
    %4 = vector.broadcast %cst_2 : f32 to vector<2x16x16xf32>
    %5 = arith.mulf %3, %4 : vector<2x16x16xf32>
    %c0_3 = arith.constant 0 : index
    %c0_4 = arith.constant 0 : index
    %c0_5 = arith.constant 0 : index
    %c0_6 = arith.constant 0 : index
    %6 = vector.load %arg2[%c0_3, %c0_4, %c0_5, %c0_6] : memref<2x5x16x16xf32, #tpu.memory_space<vmem>>, vector<2x1x16x16xf32>
    %7 = vector.shape_cast %6 : vector<2x1x16x16xf32> to vector<2x16x16xf32>
    %8 = vector.shape_cast %5 : vector<2x16x16xf32> to vector<2x1x16x16xf32>
    tpu.vector_store %arg2[%c0_3, %c0_4, %c0_5, %c0_6], %8 {strides = array<i32>} : memref<2x5x16x16xf32, #tpu.memory_space<vmem>>, vector<2x1x16x16xf32>,
    %9 = vector.extract_strided_slice %0 {offsets = [0, 4, 4], sizes = [2, 18, 16], strides = [1, 1, 1]} : vector<2x26x26xf32> to vector<2x18x16xf32>
    %cst_7 = arith.constant 0.00664835423 : f32
    %10 = vector.broadcast %cst_7 : f32 to vector<2x18x16xf32>
    %11 = arith.mulf %9, %10 : vector<2x18x16xf32>
    %12 = vector.extract_strided_slice %0 {offsets = [0, 4, 5], sizes = [2, 18, 16], strides = [1, 1, 1]} : vector<2x26x26xf32> to vector<2x18x16xf32>
    %cst_8 = arith.constant 0.986703276 : f32
    %13 = vector.broadcast %cst_8 : f32 to vector<2x18x16xf32>
    %14 = arith.mulf %12, %13 : vector<2x18x16xf32>
    %15 = arith.addf %11, %14 : vector<2x18x16xf32>
    %16 = vector.extract_strided_slice %0 {offsets = [0, 4, 6], sizes = [2, 18, 16], strides = [1, 1, 1]} : vector<2x26x26xf32> to vector<2x18x16xf32>
    %cst_9 = arith.constant 0.00664835423 : f32
    %17 = vector.broadcast %cst_9 : f32 to vector<2x18x16xf32>
    %18 = arith.mulf %16, %17 : vector<2x18x16xf32>
    %19 = arith.addf %15, %18 : vector<2x18x16xf32>
    %20 = vector.extract_strided_slice %19 {offsets = [0, 0, 0], sizes = [2, 16, 16], strides = [1, 1, 1]} : vector<2x18x16xf32> to vector<2x16x16xf32>
    %cst_10 = arith.constant 0.00664835423 : f32
    %21 = vector.broadcast %cst_10 : f32 to vector<2x16x16xf32>
    %22 = arith.mulf %20, %21 : vector<2x16x16xf32>
    %23 = vector.extract_strided_slice %19 {offsets = [0, 1, 0], sizes = [2, 16, 16], strides = [1, 1, 1]} : vector<2x18x16xf32> to vector<2x16x16xf32>
    %cst_11 = arith.constant 0.986703276 : f32
    %24 = vector.broadcast %cst_11 : f32 to vector<2x16x16xf32>
    %25 = arith.mulf %23, %24 : vector<2x16x16xf32>
    %26 = arith.addf %22, %25 : vector<2x16x16xf32>
    %27 = vector.extract_strided_slice %19 {offsets = [0, 2, 0], sizes = [2, 16, 16], strides = [1, 1, 1]} : vector<2x18x16xf32> to vector<2x16x16xf32>
    %cst_12 = arith.constant 0.00664835423 : f32
    %28 = vector.broadcast %cst_12 : f32 to vector<2x16x16xf32>
    %29 = arith.mulf %27, %28 : vector<2x16x16xf32>
    %30 = arith.addf %26, %29 : vector<2x16x16xf32>
    %c0_13 = arith.constant 0 : index
    %c1 = arith.constant 1 : index
    %c0_14 = arith.constant 0 : index
    %c0_15 = arith.constant 0 : index
    %31 = vector.load %arg2[%c0_13, %c1, %c0_14, %c0_15] : memref<2x5x16x16xf32, #tpu.memory_space<vmem>>, vector<2x1x16x16xf32>
    %32 = vector.shape_cast %31 : vector<2x1x16x16xf32> to vector<2x16x16xf32>
    %33 = vector.shape_cast %30 : vector<2x16x16xf32> to vector<2x1x16x16xf32>
    tpu.vector_store %arg2[%c0_13, %c1, %c0_14, %c0_15], %33 {strides = array<i32>} : memref<2x5x16x16xf32, #tpu.memory_space<vmem>>, vector<2x1x16x16xf32>,
    %34 = vector.extract_strided_slice %0 {offsets = [0, 0, 0], sizes = [2, 26, 16], strides = [1, 1, 1]} : vector<2x26x26xf32> to vector<2x26x16xf32>
    %cst_16 = arith.constant 1.4867195E-6 : f32
    %35 = vector.broadcast %cst_16 : f32 to vector<2x26x16xf32>
    %36 = arith.mulf %34, %35 : vector<2x26x16xf32>
    %37 = vector.extract_strided_slice %0 {offsets = [0, 0, 1], sizes = [2, 26, 16], strides = [1, 1, 1]} : vector<2x26x26xf32> to vector<2x26x16xf32>
    %cst_17 = arith.constant 1.33830225E-4 : f32
    %38 = vector.broadcast %cst_17 : f32 to vector<2x26x16xf32>
    %39 = arith.mulf %37, %38 : vector<2x26x16xf32>
    %40 = arith.addf %36, %39 : vector<2x26x16xf32>
    %41 = vector.extract_strided_slice %0 {offsets = [0, 0, 2], sizes = [2, 26, 16], strides = [1, 1, 1]} : vector<2x26x26xf32> to vector<2x26x16xf32>
    %cst_18 = arith.constant 0.00443184841 : f32
    %42 = vector.broadcast %cst_18 : f32 to vector<2x26x16xf32>
    %43 = arith.mulf %41, %42 : vector<2x26x16xf32>
    %44 = arith.addf %40, %43 : vector<2x26x16xf32>
    %45 = vector.extract_strided_slice %0 {offsets = [0, 0, 3], sizes = [2, 26, 16], strides = [1, 1, 1]} : vector<2x26x26xf32> to vector<2x26x16xf32>
    %cst_19 = arith.constant 0.0539909676 : f32
    %46 = vector.broadcast %cst_19 : f32 to vector<2x26x16xf32>
    %47 = arith.mulf %45, %46 : vector<2x26x16xf32>
    %48 = arith.addf %44, %47 : vector<2x26x16xf32>
    %49 = vector.extract_strided_slice %0 {offsets = [0, 0, 4], sizes = [2, 26, 16], strides = [1, 1, 1]} : vector<2x26x26xf32> to vector<2x26x16xf32>
    %cst_20 = arith.constant 0.241970733 : f32
    %50 = vector.broadcast %cst_20 : f32 to vector<2x26x16xf32>
    %51 = arith.mulf %49, %50 : vector<2x26x16xf32>
    %52 = arith.addf %48, %51 : vector<2x26x16xf32>
    %53 = vector.extract_strided_slice %0 {offsets = [0, 0, 5], sizes = [2, 26, 16], strides = [1, 1, 1]} : vector<2x26x26xf32> to vector<2x26x16xf32>
    %cst_21 = arith.constant 0.398942292 : f32
    %54 = vector.broadcast %cst_21 : f32 to vector<2x26x16xf32>
    %55 = arith.mulf %53, %54 : vector<2x26x16xf32>
    %56 = arith.addf %52, %55 : vector<2x26x16xf32>
    %57 = vector.extract_strided_slice %0 {offsets = [0, 0, 6], sizes = [2, 26, 16], strides = [1, 1, 1]} : vector<2x26x26xf32> to vector<2x26x16xf32>
    %cst_22 = arith.constant 0.241970733 : f32
    %58 = vector.broadcast %cst_22 : f32 to vector<2x26x16xf32>
    %59 = arith.mulf %57, %58 : vector<2x26x16xf32>
    %60 = arith.addf %56, %59 : vector<2x26x16xf32>
    %61 = vector.extract_strided_slice %0 {offsets = [0, 0, 7], sizes = [2, 26, 16], strides = [1, 1, 1]} : vector<2x26x26xf32> to vector<2x26x16xf32>
    %cst_23 = arith.constant 0.0539909676 : f32
    %62 = vector.broadcast %cst_23 : f32 to vector<2x26x16xf32>
    %63 = arith.mulf %61, %62 : vector<2x26x16xf32>
    %64 = arith.addf %60, %63 : vector<2x26x16xf32>
    %65 = vector.extract_strided_slice %0 {offsets = [0, 0, 8], sizes = [2, 26, 16], strides = [1, 1, 1]} : vector<2x26x26xf32> to vector<2x26x16xf32>
    %cst_24 = arith.constant 0.00443184841 : f32
    %66 = vector.broadcast %cst_24 : f32 to vector<2x26x16xf32>
    %67 = arith.mulf %65, %66 : vector<2x26x16xf32>
    %68 = arith.addf %64, %67 : vector<2x26x16xf32>
    %69 = vector.extract_strided_slice %0 {offsets = [0, 0, 9], sizes = [2, 26, 16], strides = [1, 1, 1]} : vector<2x26x26xf32> to vector<2x26x16xf32>
    %cst_25 = arith.constant 1.33830225E-4 : f32
    %70 = vector.broadcast %cst_25 : f32 to vector<2x26x16xf32>
    %71 = arith.mulf %69, %70 : vector<2x26x16xf32>
    %72 = arith.addf %68, %71 : vector<2x26x16xf32>
    %73 = vector.extract_strided_slice %0 {offsets = [0, 0, 10], sizes = [2, 26, 16], strides = [1, 1, 1]} : vector<2x26x26xf32> to vector<2x26x16xf32>
    %cst_26 = arith.constant 1.4867195E-6 : f32
    %74 = vector.broadcast %cst_26 : f32 to vector<2x26x16xf32>
    %75 = arith.mulf %73, %74 : vector<2x26x16xf32>
    %76 = arith.addf %72, %75 : vector<2x26x16xf32>
    %77 = vector.extract_strided_slice %76 {offsets = [0, 0, 0], sizes = [2, 16, 16], strides = [1, 1, 1]} : vector<2x26x16xf32> to vector<2x16x16xf32>
    %cst_27 = arith.constant 1.4867195E-6 : f32
    %78 = vector.broadcast %cst_27 : f32 to vector<2x16x16xf32>
    %79 = arith.mulf %77, %78 : vector<2x16x16xf32>
    %80 = vector.extract_strided_slice %76 {offsets = [0, 1, 0], sizes = [2, 16, 16], strides = [1, 1, 1]} : vector<2x26x16xf32> to vector<2x16x16xf32>
    %cst_28 = arith.constant 1.33830225E-4 : f32
    %81 = vector.broadcast %cst_28 : f32 to vector<2x16x16xf32>
    %82 = arith.mulf %80, %81 : vector<2x16x16xf32>
    %83 = arith.addf %79, %82 : vector<2x16x16xf32>
    %84 = vector.extract_strided_slice %76 {offsets = [0, 2, 0], sizes = [2, 16, 16], strides = [1, 1, 1]} : vector<2x26x16xf32> to vector<2x16x16xf32>
    %cst_29 = arith.constant 0.00443184841 : f32
    %85 = vector.broadcast %cst_29 : f32 to vector<2x16x16xf32>
    %86 = arith.mulf %84, %85 : vector<2x16x16xf32>
    %87 = arith.addf %83, %86 : vector<2x16x16xf32>
    %88 = vector.extract_strided_slice %76 {offsets = [0, 3, 0], sizes = [2, 16, 16], strides = [1, 1, 1]} : vector<2x26x16xf32> to vector<2x16x16xf32>
    %cst_30 = arith.constant 0.0539909676 : f32
    %89 = vector.broadcast %cst_30 : f32 to vector<2x16x16xf32>
    %90 = arith.mulf %88, %89 : vector<2x16x16xf32>
    %91 = arith.addf %87, %90 : vector<2x16x16xf32>
    %92 = vector.extract_strided_slice %76 {offsets = [0, 4, 0], sizes = [2, 16, 16], strides = [1, 1, 1]} : vector<2x26x16xf32> to vector<2x16x16xf32>
    %cst_31 = arith.constant 0.241970733 : f32
    %93 = vector.broadcast %cst_31 : f32 to vector<2x16x16xf32>
    %94 = arith.mulf %92, %93 : vector<2x16x16xf32>
    %95 = arith.addf %91, %94 : vector<2x16x16xf32>
    %96 = vector.extract_strided_slice %76 {offsets = [0, 5, 0], sizes = [2, 16, 16], strides = [1, 1, 1]} : vector<2x26x16xf32> to vector<2x16x16xf32>
    %cst_32 = arith.constant 0.398942292 : f32
    %97 = vector.broadcast %cst_32 : f32 to vector<2x16x16xf32>
    %98 = arith.mulf %96, %97 : vector<2x16x16xf32>
    %99 = arith.addf %95, %98 : vector<2x16x16xf32>
    %100 = vector.extract_strided_slice %76 {offsets = [0, 6, 0], sizes = [2, 16, 16], strides = [1, 1, 1]} : vector<2x26x16xf32> to vector<2x16x16xf32>
    %cst_33 = arith.constant 0.241970733 : f32
    %101 = vector.broadcast %cst_33 : f32 to vector<2x16x16xf32>
    %102 = arith.mulf %100, %101 : vector<2x16x16xf32>
    %103 = arith.addf %99, %102 : vector<2x16x16xf32>
    %104 = vector.extract_strided_slice %76 {offsets = [0, 7, 0], sizes = [2, 16, 16], strides = [1, 1, 1]} : vector<2x26x16xf32> to vector<2x16x16xf32>
    %cst_34 = arith.constant 0.0539909676 : f32
    %105 = vector.broadcast %cst_34 : f32 to vector<2x16x16xf32>
    %106 = arith.mulf %104, %105 : vector<2x16x16xf32>
    %107 = arith.addf %103, %106 : vector<2x16x16xf32>
    %108 = vector.extract_strided_slice %76 {offsets = [0, 8, 0], sizes = [2, 16, 16], strides = [1, 1, 1]} : vector<2x26x16xf32> to vector<2x16x16xf32>
    %cst_35 = arith.constant 0.00443184841 : f32
    %109 = vector.broadcast %cst_35 : f32 to vector<2x16x16xf32>
    %110 = arith.mulf %108, %109 : vector<2x16x16xf32>
    %111 = arith.addf %107, %110 : vector<2x16x16xf32>
    %112 = vector.extract_strided_slice %76 {offsets = [0, 9, 0], sizes = [2, 16, 16], strides = [1, 1, 1]} : vector<2x26x16xf32> to vector<2x16x16xf32>
    %cst_36 = arith.constant 1.33830225E-4 : f32
    %113 = vector.broadcast %cst_36 : f32 to vector<2x16x16xf32>
    %114 = arith.mulf %112, %113 : vector<2x16x16xf32>
    %115 = arith.addf %111, %114 : vector<2x16x16xf32>
    %116 = vector.extract_strided_slice %76 {offsets = [0, 10, 0], sizes = [2, 16, 16], strides = [1, 1, 1]} : vector<2x26x16xf32> to vector<2x16x16xf32>
    %cst_37 = arith.constant 1.4867195E-6 : f32
    %117 = vector.broadcast %cst_37 : f32 to vector<2x16x16xf32>
    %118 = arith.mulf %116, %117 : vector<2x16x16xf32>
    %119 = arith.addf %115, %118 : vector<2x16x16xf32>
    %c0_38 = arith.constant 0 : index
    %c2 = arith.constant 2 : index
    %c0_39 = arith.constant 0 : index
    %c0_40 = arith.constant 0 : index
    %120 = vector.load %arg2[%c0_38, %c2, %c0_39, %c0_40] : memref<2x5x16x16xf32, #tpu.memory_space<vmem>>, vector<2x1x16x16xf32>
    %121 = vector.shape_cast %120 : vector<2x1x16x16xf32> to vector<2x16x16xf32>
    %122 = vector.shape_cast %119 : vector<2x16x16xf32> to vector<2x1x16x16xf32>
    tpu.vector_store %arg2[%c0_38, %c2, %c0_39, %c0_40], %122 {strides = array<i32>} : memref<2x5x16x16xf32, #tpu.memory_space<vmem>>, vector<2x1x16x16xf32>,
    %123 = vector.extract_strided_slice %0 {offsets = [0, 0, 0], sizes = [2, 26, 16], strides = [1, 1, 1]} : vector<2x26x26xf32> to vector<2x26x16xf32>
    %cst_41 = arith.constant 0.0393180884 : f32
    %124 = vector.broadcast %cst_41 : f32 to vector<2x26x16xf32>
    %125 = arith.mulf %123, %124 : vector<2x26x16xf32>
    %126 = vector.extract_strided_slice %0 {offsets = [0, 0, 1], sizes = [2, 26, 16], strides = [1, 1, 1]} : vector<2x26x26xf32> to vector<2x26x16xf32>
    %cst_42 = arith.constant 0.061663039 : f32
    %127 = vector.broadcast %cst_42 : f32 to vector<2x26x16xf32>
    %128 = arith.mulf %126, %127 : vector<2x26x16xf32>
    %129 = arith.addf %125, %128 : vector<2x26x16xf32>
    %130 = vector.extract_strided_slice %0 {offsets = [0, 0, 2], sizes = [2, 26, 16], strides = [1, 1, 1]} : vector<2x26x26xf32> to vector<2x26x16xf32>
    %cst_43 = arith.constant 0.0875040218 : f32
    %131 = vector.broadcast %cst_43 : f32 to vector<2x26x16xf32>
    %132 = arith.mulf %130, %131 : vector<2x26x16xf32>
    %133 = arith.addf %129, %132 : vector<2x26x16xf32>
    %134 = vector.extract_strided_slice %0 {offsets = [0, 0, 3], sizes = [2, 26, 16], strides = [1, 1, 1]} : vector<2x26x26xf32> to vector<2x26x16xf32>
    %cst_44 = arith.constant 0.112357385 : f32
    %135 = vector.broadcast %cst_44 : f32 to vector<2x26x16xf32>
    %136 = arith.mulf %134, %135 : vector<2x26x16xf32>
    %137 = arith.addf %133, %136 : vector<2x26x16xf32>
    %138 = vector.extract_strided_slice %0 {offsets = [0, 0, 4], sizes = [2, 26, 16], strides = [1, 1, 1]} : vector<2x26x26xf32> to vector<2x26x16xf32>
    %cst_45 = arith.constant 0.130540654 : f32
    %139 = vector.broadcast %cst_45 : f32 to vector<2x26x16xf32>
    %140 = arith.mulf %138, %139 : vector<2x26x16xf32>
    %141 = arith.addf %137, %140 : vector<2x26x16xf32>
    %142 = vector.extract_strided_slice %0 {offsets = [0, 0, 5], sizes = [2, 26, 16], strides = [1, 1, 1]} : vector<2x26x26xf32> to vector<2x26x16xf32>
    %cst_46 = arith.constant 0.137233615 : f32
    %143 = vector.broadcast %cst_46 : f32 to vector<2x26x16xf32>
    %144 = arith.mulf %142, %143 : vector<2x26x16xf32>
    %145 = arith.addf %141, %144 : vector<2x26x16xf32>
    %146 = vector.extract_strided_slice %0 {offsets = [0, 0, 6], sizes = [2, 26, 16], strides = [1, 1, 1]} : vector<2x26x26xf32> to vector<2x26x16xf32>
    %cst_47 = arith.constant 0.130540654 : f32
    %147 = vector.broadcast %cst_47 : f32 to vector<2x26x16xf32>
    %148 = arith.mulf %146, %147 : vector<2x26x16xf32>
    %149 = arith.addf %145, %148 : vector<2x26x16xf32>
    %150 = vector.extract_strided_slice %0 {offsets = [0, 0, 7], sizes = [2, 26, 16], strides = [1, 1, 1]} : vector<2x26x26xf32> to vector<2x26x16xf32>
    %cst_48 = arith.constant 0.112357385 : f32
    %151 = vector.broadcast %cst_48 : f32 to vector<2x26x16xf32>
    %152 = arith.mulf %150, %151 : vector<2x26x16xf32>
    %153 = arith.addf %149, %152 : vector<2x26x16xf32>
    %154 = vector.extract_strided_slice %0 {offsets = [0, 0, 8], sizes = [2, 26, 16], strides = [1, 1, 1]} : vector<2x26x26xf32> to vector<2x26x16xf32>
    %cst_49 = arith.constant 0.0875040218 : f32
    %155 = vector.broadcast %cst_49 : f32 to vector<2x26x16xf32>
    %156 = arith.mulf %154, %155 : vector<2x26x16xf32>
    %157 = arith.addf %153, %156 : vector<2x26x16xf32>
    %158 = vector.extract_strided_slice %0 {offsets = [0, 0, 9], sizes = [2, 26, 16], strides = [1, 1, 1]} : vector<2x26x26xf32> to vector<2x26x16xf32>
    %cst_50 = arith.constant 0.061663039 : f32
    %159 = vector.broadcast %cst_50 : f32 to vector<2x26x16xf32>
    %160 = arith.mulf %158, %159 : vector<2x26x16xf32>
    %161 = arith.addf %157, %160 : vector<2x26x16xf32>
    %162 = vector.extract_strided_slice %0 {offsets = [0, 0, 10], sizes = [2, 26, 16], strides = [1, 1, 1]} : vector<2x26x26xf32> to vector<2x26x16xf32>
    %cst_51 = arith.constant 0.0393180884 : f32
    %163 = vector.broadcast %cst_51 : f32 to vector<2x26x16xf32>
    %164 = arith.mulf %162, %163 : vector<2x26x16xf32>
    %165 = arith.addf %161, %164 : vector<2x26x16xf32>
    %166 = vector.extract_strided_slice %165 {offsets = [0, 0, 0], sizes = [2, 16, 16], strides = [1, 1, 1]} : vector<2x26x16xf32> to vector<2x16x16xf32>
    %cst_52 = arith.constant 0.0393180884 : f32
    %167 = vector.broadcast %cst_52 : f32 to vector<2x16x16xf32>
    %168 = arith.mulf %166, %167 : vector<2x16x16xf32>
    %169 = vector.extract_strided_slice %165 {offsets = [0, 1, 0], sizes = [2, 16, 16], strides = [1, 1, 1]} : vector<2x26x16xf32> to vector<2x16x16xf32>
    %cst_53 = arith.constant 0.061663039 : f32
    %170 = vector.broadcast %cst_53 : f32 to vector<2x16x16xf32>
    %171 = arith.mulf %169, %170 : vector<2x16x16xf32>
    %172 = arith.addf %168, %171 : vector<2x16x16xf32>
    %173 = vector.extract_strided_slice %165 {offsets = [0, 2, 0], sizes = [2, 16, 16], strides = [1, 1, 1]} : vector<2x26x16xf32> to vector<2x16x16xf32>
    %cst_54 = arith.constant 0.0875040218 : f32
    %174 = vector.broadcast %cst_54 : f32 to vector<2x16x16xf32>
    %175 = arith.mulf %173, %174 : vector<2x16x16xf32>
    %176 = arith.addf %172, %175 : vector<2x16x16xf32>
    %177 = vector.extract_strided_slice %165 {offsets = [0, 3, 0], sizes = [2, 16, 16], strides = [1, 1, 1]} : vector<2x26x16xf32> to vector<2x16x16xf32>
    %cst_55 = arith.constant 0.112357385 : f32
    %178 = vector.broadcast %cst_55 : f32 to vector<2x16x16xf32>
    %179 = arith.mulf %177, %178 : vector<2x16x16xf32>
    %180 = arith.addf %176, %179 : vector<2x16x16xf32>
    %181 = vector.extract_strided_slice %165 {offsets = [0, 4, 0], sizes = [2, 16, 16], strides = [1, 1, 1]} : vector<2x26x16xf32> to vector<2x16x16xf32>
    %cst_56 = arith.constant 0.130540654 : f32
    %182 = vector.broadcast %cst_56 : f32 to vector<2x16x16xf32>
    %183 = arith.mulf %181, %182 : vector<2x16x16xf32>
    %184 = arith.addf %180, %183 : vector<2x16x16xf32>
    %185 = vector.extract_strided_slice %165 {offsets = [0, 5, 0], sizes = [2, 16, 16], strides = [1, 1, 1]} : vector<2x26x16xf32> to vector<2x16x16xf32>
    %cst_57 = arith.constant 0.137233615 : f32
    %186 = vector.broadcast %cst_57 : f32 to vector<2x16x16xf32>
    %187 = arith.mulf %185, %186 : vector<2x16x16xf32>
    %188 = arith.addf %184, %187 : vector<2x16x16xf32>
    %189 = vector.extract_strided_slice %165 {offsets = [0, 6, 0], sizes = [2, 16, 16], strides = [1, 1, 1]} : vector<2x26x16xf32> to vector<2x16x16xf32>
    %cst_58 = arith.constant 0.130540654 : f32
    %190 = vector.broadcast %cst_58 : f32 to vector<2x16x16xf32>
    %191 = arith.mulf %189, %190 : vector<2x16x16xf32>
    %192 = arith.addf %188, %191 : vector<2x16x16xf32>
    %193 = vector.extract_strided_slice %165 {offsets = [0, 7, 0], sizes = [2, 16, 16], strides = [1, 1, 1]} : vector<2x26x16xf32> to vector<2x16x16xf32>
    %cst_59 = arith.constant 0.112357385 : f32
    %194 = vector.broadcast %cst_59 : f32 to vector<2x16x16xf32>
    %195 = arith.mulf %193, %194 : vector<2x16x16xf32>
    %196 = arith.addf %192, %195 : vector<2x16x16xf32>
    %197 = vector.extract_strided_slice %165 {offsets = [0, 8, 0], sizes = [2, 16, 16], strides = [1, 1, 1]} : vector<2x26x16xf32> to vector<2x16x16xf32>
    %cst_60 = arith.constant 0.0875040218 : f32
    %198 = vector.broadcast %cst_60 : f32 to vector<2x16x16xf32>
    %199 = arith.mulf %197, %198 : vector<2x16x16xf32>
    %200 = arith.addf %196, %199 : vector<2x16x16xf32>
    %201 = vector.extract_strided_slice %165 {offsets = [0, 9, 0], sizes = [2, 16, 16], strides = [1, 1, 1]} : vector<2x26x16xf32> to vector<2x16x16xf32>
    %cst_61 = arith.constant 0.061663039 : f32
    %202 = vector.broadcast %cst_61 : f32 to vector<2x16x16xf32>
    %203 = arith.mulf %201, %202 : vector<2x16x16xf32>
    %204 = arith.addf %200, %203 : vector<2x16x16xf32>
    %205 = vector.extract_strided_slice %165 {offsets = [0, 10, 0], sizes = [2, 16, 16], strides = [1, 1, 1]} : vector<2x26x16xf32> to vector<2x16x16xf32>
    %cst_62 = arith.constant 0.0393180884 : f32
    %206 = vector.broadcast %cst_62 : f32 to vector<2x16x16xf32>
    %207 = arith.mulf %205, %206 : vector<2x16x16xf32>
    %208 = arith.addf %204, %207 : vector<2x16x16xf32>
    %c0_63 = arith.constant 0 : index
    %c3 = arith.constant 3 : index
    %c0_64 = arith.constant 0 : index
    %c0_65 = arith.constant 0 : index
    %209 = vector.load %arg2[%c0_63, %c3, %c0_64, %c0_65] : memref<2x5x16x16xf32, #tpu.memory_space<vmem>>, vector<2x1x16x16xf32>
    %210 = vector.shape_cast %209 : vector<2x1x16x16xf32> to vector<2x16x16xf32>
    %211 = vector.shape_cast %208 : vector<2x16x16xf32> to vector<2x1x16x16xf32>
    tpu.vector_store %arg2[%c0_63, %c3, %c0_64, %c0_65], %211 {strides = array<i32>} : memref<2x5x16x16xf32, #tpu.memory_space<vmem>>, vector<2x1x16x16xf32>,
    %212 = vector.extract_strided_slice %0 {offsets = [0, 0, 0], sizes = [2, 26, 16], strides = [1, 1, 1]} : vector<2x26x26xf32> to vector<2x26x16xf32>
    %cst_66 = arith.constant 0.0842588245 : f32
    %213 = vector.broadcast %cst_66 : f32 to vector<2x26x16xf32>
    %214 = arith.mulf %212, %213 : vector<2x26x16xf32>
    %215 = vector.extract_strided_slice %0 {offsets = [0, 0, 1], sizes = [2, 26, 16], strides = [1, 1, 1]} : vector<2x26x26xf32> to vector<2x26x16xf32>
    %cst_67 = arith.constant 0.0881370753 : f32
    %216 = vector.broadcast %cst_67 : f32 to vector<2x26x16xf32>
    %217 = arith.mulf %215, %216 : vector<2x26x16xf32>
    %218 = arith.addf %214, %217 : vector<2x26x16xf32>
    %219 = vector.extract_strided_slice %0 {offsets = [0, 0, 2], sizes = [2, 26, 16], strides = [1, 1, 1]} : vector<2x26x26xf32> to vector<2x26x16xf32>
    %cst_68 = arith.constant 0.0912764966 : f32
    %220 = vector.broadcast %cst_68 : f32 to vector<2x26x16xf32>
    %221 = arith.mulf %219, %220 : vector<2x26x16xf32>
    %222 = arith.addf %218, %221 : vector<2x26x16xf32>
    %223 = vector.extract_strided_slice %0 {offsets = [0, 0, 3], sizes = [2, 26, 16], strides = [1, 1, 1]} : vector<2x26x26xf32> to vector<2x26x16xf32>
    %cst_69 = arith.constant 0.0935871675 : f32
    %224 = vector.broadcast %cst_69 : f32 to vector<2x26x16xf32>
    %225 = arith.mulf %223, %224 : vector<2x26x16xf32>
    %226 = arith.addf %222, %225 : vector<2x26x16xf32>
    %227 = vector.extract_strided_slice %0 {offsets = [0, 0, 4], sizes = [2, 26, 16], strides = [1, 1, 1]} : vector<2x26x26xf32> to vector<2x26x16xf32>
    %cst_70 = arith.constant 0.0950015559 : f32
    %228 = vector.broadcast %cst_70 : f32 to vector<2x26x16xf32>
    %229 = arith.mulf %227, %228 : vector<2x26x16xf32>
    %230 = arith.addf %226, %229 : vector<2x26x16xf32>
    %231 = vector.extract_strided_slice %0 {offsets = [0, 0, 5], sizes = [2, 26, 16], strides = [1, 1, 1]} : vector<2x26x26xf32> to vector<2x26x16xf32>
    %cst_71 = arith.constant 0.0954777523 : f32
    %232 = vector.broadcast %cst_71 : f32 to vector<2x26x16xf32>
    %233 = arith.mulf %231, %232 : vector<2x26x16xf32>
    %234 = arith.addf %230, %233 : vector<2x26x16xf32>
    %235 = vector.extract_strided_slice %0 {offsets = [0, 0, 6], sizes = [2, 26, 16], strides = [1, 1, 1]} : vector<2x26x26xf32> to vector<2x26x16xf32>
    %cst_72 = arith.constant 0.0950015559 : f32
    %236 = vector.broadcast %cst_72 : f32 to vector<2x26x16xf32>
    %237 = arith.mulf %235, %236 : vector<2x26x16xf32>
    %238 = arith.addf %234, %237 : vector<2x26x16xf32>
    %239 = vector.extract_strided_slice %0 {offsets = [0, 0, 7], sizes = [2, 26, 16], strides = [1, 1, 1]} : vector<2x26x26xf32> to vector<2x26x16xf32>
    %cst_73 = arith.constant 0.0935871675 : f32
    %240 = vector.broadcast %cst_73 : f32 to vector<2x26x16xf32>
    %241 = arith.mulf %239, %240 : vector<2x26x16xf32>
    %242 = arith.addf %238, %241 : vector<2x26x16xf32>
    %243 = vector.extract_strided_slice %0 {offsets = [0, 0, 8], sizes = [2, 26, 16], strides = [1, 1, 1]} : vector<2x26x26xf32> to vector<2x26x16xf32>
    %cst_74 = arith.constant 0.0912764966 : f32
    %244 = vector.broadcast %cst_74 : f32 to vector<2x26x16xf32>
    %245 = arith.mulf %243, %244 : vector<2x26x16xf32>
    %246 = arith.addf %242, %245 : vector<2x26x16xf32>
    %247 = vector.extract_strided_slice %0 {offsets = [0, 0, 9], sizes = [2, 26, 16], strides = [1, 1, 1]} : vector<2x26x26xf32> to vector<2x26x16xf32>
    %cst_75 = arith.constant 0.0881370753 : f32
    %248 = vector.broadcast %cst_75 : f32 to vector<2x26x16xf32>
    %249 = arith.mulf %247, %248 : vector<2x26x16xf32>
    %250 = arith.addf %246, %249 : vector<2x26x16xf32>
    %251 = vector.extract_strided_slice %0 {offsets = [0, 0, 10], sizes = [2, 26, 16], strides = [1, 1, 1]} : vector<2x26x26xf32> to vector<2x26x16xf32>
    %cst_76 = arith.constant 0.0842588245 : f32
    %252 = vector.broadcast %cst_76 : f32 to vector<2x26x16xf32>
    %253 = arith.mulf %251, %252 : vector<2x26x16xf32>
    %254 = arith.addf %250, %253 : vector<2x26x16xf32>
    %255 = vector.extract_strided_slice %254 {offsets = [0, 0, 0], sizes = [2, 16, 16], strides = [1, 1, 1]} : vector<2x26x16xf32> to vector<2x16x16xf32>
    %cst_77 = arith.constant 0.0842588245 : f32
    %256 = vector.broadcast %cst_77 : f32 to vector<2x16x16xf32>
    %257 = arith.mulf %255, %256 : vector<2x16x16xf32>
    %258 = vector.extract_strided_slice %254 {offsets = [0, 1, 0], sizes = [2, 16, 16], strides = [1, 1, 1]} : vector<2x26x16xf32> to vector<2x16x16xf32>
    %cst_78 = arith.constant 0.0881370753 : f32
    %259 = vector.broadcast %cst_78 : f32 to vector<2x16x16xf32>
    %260 = arith.mulf %258, %259 : vector<2x16x16xf32>
    %261 = arith.addf %257, %260 : vector<2x16x16xf32>
    %262 = vector.extract_strided_slice %254 {offsets = [0, 2, 0], sizes = [2, 16, 16], strides = [1, 1, 1]} : vector<2x26x16xf32> to vector<2x16x16xf32>
    %cst_79 = arith.constant 0.0912764966 : f32
    %263 = vector.broadcast %cst_79 : f32 to vector<2x16x16xf32>
    %264 = arith.mulf %262, %263 : vector<2x16x16xf32>
    %265 = arith.addf %261, %264 : vector<2x16x16xf32>
    %266 = vector.extract_strided_slice %254 {offsets = [0, 3, 0], sizes = [2, 16, 16], strides = [1, 1, 1]} : vector<2x26x16xf32> to vector<2x16x16xf32>
    %cst_80 = arith.constant 0.0935871675 : f32
    %267 = vector.broadcast %cst_80 : f32 to vector<2x16x16xf32>
    %268 = arith.mulf %266, %267 : vector<2x16x16xf32>
    %269 = arith.addf %265, %268 : vector<2x16x16xf32>
    %270 = vector.extract_strided_slice %254 {offsets = [0, 4, 0], sizes = [2, 16, 16], strides = [1, 1, 1]} : vector<2x26x16xf32> to vector<2x16x16xf32>
    %cst_81 = arith.constant 0.0950015559 : f32
    %271 = vector.broadcast %cst_81 : f32 to vector<2x16x16xf32>
    %272 = arith.mulf %270, %271 : vector<2x16x16xf32>
    %273 = arith.addf %269, %272 : vector<2x16x16xf32>
    %274 = vector.extract_strided_slice %254 {offsets = [0, 5, 0], sizes = [2, 16, 16], strides = [1, 1, 1]} : vector<2x26x16xf32> to vector<2x16x16xf32>
    %cst_82 = arith.constant 0.0954777523 : f32
    %275 = vector.broadcast %cst_82 : f32 to vector<2x16x16xf32>
    %276 = arith.mulf %274, %275 : vector<2x16x16xf32>
    %277 = arith.addf %273, %276 : vector<2x16x16xf32>
    %278 = vector.extract_strided_slice %254 {offsets = [0, 6, 0], sizes = [2, 16, 16], strides = [1, 1, 1]} : vector<2x26x16xf32> to vector<2x16x16xf32>
    %cst_83 = arith.constant 0.0950015559 : f32
    %279 = vector.broadcast %cst_83 : f32 to vector<2x16x16xf32>
    %280 = arith.mulf %278, %279 : vector<2x16x16xf32>
    %281 = arith.addf %277, %280 : vector<2x16x16xf32>
    %282 = vector.extract_strided_slice %254 {offsets = [0, 7, 0], sizes = [2, 16, 16], strides = [1, 1, 1]} : vector<2x26x16xf32> to vector<2x16x16xf32>
    %cst_84 = arith.constant 0.0935871675 : f32
    %283 = vector.broadcast %cst_84 : f32 to vector<2x16x16xf32>
    %284 = arith.mulf %282, %283 : vector<2x16x16xf32>
    %285 = arith.addf %281, %284 : vector<2x16x16xf32>
    %286 = vector.extract_strided_slice %254 {offsets = [0, 8, 0], sizes = [2, 16, 16], strides = [1, 1, 1]} : vector<2x26x16xf32> to vector<2x16x16xf32>
    %cst_85 = arith.constant 0.0912764966 : f32
    %287 = vector.broadcast %cst_85 : f32 to vector<2x16x16xf32>
    %288 = arith.mulf %286, %287 : vector<2x16x16xf32>
    %289 = arith.addf %285, %288 : vector<2x16x16xf32>
    %290 = vector.extract_strided_slice %254 {offsets = [0, 9, 0], sizes = [2, 16, 16], strides = [1, 1, 1]} : vector<2x26x16xf32> to vector<2x16x16xf32>
    %cst_86 = arith.constant 0.0881370753 : f32
    %291 = vector.broadcast %cst_86 : f32 to vector<2x16x16xf32>
    %292 = arith.mulf %290, %291 : vector<2x16x16xf32>
    %293 = arith.addf %289, %292 : vector<2x16x16xf32>
    %294 = vector.extract_strided_slice %254 {offsets = [0, 10, 0], sizes = [2, 16, 16], strides = [1, 1, 1]} : vector<2x26x16xf32> to vector<2x16x16xf32>
    %cst_87 = arith.constant 0.0842588245 : f32
    %295 = vector.broadcast %cst_87 : f32 to vector<2x16x16xf32>
    %296 = arith.mulf %294, %295 : vector<2x16x16xf32>
    %297 = arith.addf %293, %296 : vector<2x16x16xf32>
    %c0_88 = arith.constant 0 : index
    %c4 = arith.constant 4 : index
    %c0_89 = arith.constant 0 : index
    %c0_90 = arith.constant 0 : index
    %298 = vector.load %arg2[%c0_88, %c4, %c0_89, %c0_90] : memref<2x5x16x16xf32, #tpu.memory_space<vmem>>, vector<2x1x16x16xf32>
    %299 = vector.shape_cast %298 : vector<2x1x16x16xf32> to vector<2x16x16xf32>
    %300 = vector.shape_cast %297 : vector<2x16x16xf32> to vector<2x1x16x16xf32>
    tpu.vector_store %arg2[%c0_88, %c4, %c0_89, %c0_90], %300 {strides = array<i32>} : memref<2x5x16x16xf32, #tpu.memory_space<vmem>>, vector<2x1x16x16xf32>,
    return
  }
  func.func @transform_0(%arg0: i32) -> (i32, i32, i32) {
    %c0_i32 = arith.constant 0 : i32
    %c0_i32_0 = arith.constant 0 : i32
    %c0_i32_1 = arith.constant 0 : i32
    return %arg0, %c0_i32, %c0_i32_0 : i32, i32, i32
  }
  func.func @transform_1(%arg0: i32) -> (i32, i32, i32, i32) {
    %c0_i32 = arith.constant 0 : i32
    %c0_i32_0 = arith.constant 0 : i32
    %c0_i32_1 = arith.constant 0 : i32
    %c0_i32_2 = arith.constant 0 : i32
    return %arg0, %c0_i32, %c0_i32_0, %c0_i32_1 : i32, i32, i32, i32
  }
}

</mosaic_0001>

<llo_original>
// kernel: tpu_custom_call.1
$region0: #{tpu_custom_call.1}
  #allocation0 [shape = 'u32[]', space=smem, size = 0x4, offset = 0x4, fixed_abs, tag = 'smem constant byte address 0x4 - core index']
  #allocation1 [shape = 'u32[144,128]{1,0:T(1,128)}', space=vmem, size = 0x12000, scoped, tag = 'internal scratch']
  %s0 = inlined_call_operand.vmem [shape: f32[2,26,26], index: 0, kind: input, shape index: {}]
  %s1 = inlined_call_operand.hbm [shape: f32[2,5,16,16], index: 1, kind: output, shape index: {}]
  %s2 = sld [smem:[#allocation0]]
  $region14: #{tpu_custom_call.1} parent=0
    _
  %s4 = ssub.s32 1, %s2
  %s5 = scalar_select 0, %s4, %s2
  $region1: #{tpu_custom_call.1} parent=0
    #allocation2 [shape = 'u8[81920]{0}', space=vmem, size = 0x14000, scoped, tag = 'output window, operand 0, single buffered']
    #allocation3 [shape = 's32[1]{0}', space=sflag, size = 0x4, scoped, tag = 'scoped memory for tpu_custom_call.1']
    %6 = vsyncpa [#allocation3], 0
    // Predicated region
    $region2: #{tpu_custom_call.1} parent=1 // pred_check
      _
    $region3: #{tpu_custom_call.1} parent=1 // pred_check_branch
      %8 = sbr.rel (0) target = $region5
    $region4: #{tpu_custom_call.1} parent=1 // pred_region
      _
    $region5: #{tpu_custom_call.1} parent=1 // pred_fallthru
      _
    %v9 = vld [vmem:[%s0] sm:$0xff]
    %v10 = vld [vmem:[%s0 + $0x8] sm:$0xff]
    %v11 = vld [vmem:[%s0 + $0x10] sm:$0xff]
    %v12 = vld [vmem:[%s0 + $0x18] sm:$0x3]
    %v13 = vld [vmem:[%s0 + $0x20] sm:$0xff]
    %v14 = vld [vmem:[%s0 + $0x28] sm:$0xff]
    %v15 = vld [vmem:[%s0 + $0x30] sm:$0xff]
    %v16 = vld [vmem:[%s0 + $0x38] sm:$0x3]
    %23 = vrot.lane.b32.xlu0 %v9, 123
    %v24 = vpop.permute.xlu0 %23
    %25 = vrot.lane.b32.xlu0 %v10, 123
    %v26 = vpop.permute.xlu0 %25
    %27 = vrot.lane.b32.xlu0 %v11, 123
    %v28 = vpop.permute.xlu0 %27
    %29 = vrot.lane.b32.xlu0 %v13, 123
    %v30 = vpop.permute.xlu0 %29
    %31 = vrot.lane.b32.xlu0 %v14, 123
    %v32 = vpop.permute.xlu0 %31
    %33 = vrot.lane.b32.xlu0 %v15, 123
    %v34 = vpop.permute.xlu0 %33
    %vm41 = vcmask 130053
    %42 = vst.msk [vmem:[#allocation2 - $0x5] sm:$0xe0] %vm41, %v24
    %vm43 = vcmask 130048
    %44 = vst.msk [vmem:[#allocation2 + $0x3] sm:$0xff] %vm43, %v26
    %vm45 = vcmask 126976
    %46 = vst.msk [vmem:[#allocation2 + $0xb] sm:$0x1f] %vm45, %v28
    %47 = vst.msk [vmem:[#allocation2 + $0x4b] sm:$0xe0] %vm41, %v30
    %48 = vst.msk [vmem:[#allocation2 + $0x53] sm:$0xff] %vm43, %v32
    %49 = vst.msk [vmem:[#allocation2 + $0x5b] sm:$0x1f] %vm45, %v34
    %v50 = vmul.f32 %v9, 0.006648354
    %v51 = vmul.f32 %v10, 0.006648354
    %v52 = vmul.f32 %v11, 0.006648354
    %v53 = vmul.f32 %v13, 0.006648354
    %v54 = vmul.f32 %v14, 0.006648354
    %v55 = vmul.f32 %v15, 0.006648354
    %v56 = vmul.f32 %v9, 0.9867033
    %v57 = vmul.f32 %v10, 0.9867033
    %v58 = vmul.f32 %v11, 0.9867033
    %v59 = vmul.f32 %v13, 0.9867033
    %v60 = vmul.f32 %v14, 0.9867033
    %v61 = vmul.f32 %v15, 0.9867033
    %68 = vrot.lane.b32.xlu0 %v56, 127
    %v69 = vpop.permute.xlu0 %68
    %70 = vrot.lane.b32.xlu0 %v57, 127
    %v71 = vpop.permute.xlu0 %70
    %72 = vrot.lane.b32.xlu0 %v58, 127
    %v73 = vpop.permute.xlu0 %72
    %74 = vrot.lane.b32.xlu0 %v59, 127
    %v75 = vpop.permute.xlu0 %74
    %76 = vrot.lane.b32.xlu0 %v60, 127
    %v77 = vpop.permute.xlu0 %76
    %78 = vrot.lane.b32.xlu0 %v61, 127
    %v79 = vpop.permute.xlu0 %78
    %v86 = vadd.f32 %v50, %v69
    %v87 = vadd.f32 %v51, %v71
    %v88 = vadd.f32 %v52, %v73
    %v89 = vadd.f32 %v53, %v75
    %v90 = vadd.f32 %v54, %v77
    %v91 = vadd.f32 %v55, %v79
    %98 = vrot.lane.b32.xlu0 %v50, 126
    %v99 = vpop.permute.xlu0 %98
    %100 = vrot.lane.b32.xlu0 %v51, 126
    %v101 = vpop.permute.xlu0 %100
    %102 = vrot.lane.b32.xlu0 %v52, 126
    %v103 = vpop.permute.xlu0 %102
    %104 = vrot.lane.b32.xlu0 %v53, 126
    %v105 = vpop.permute.xlu0 %104
    %106 = vrot.lane.b32.xlu0 %v54, 126
    %v107 = vpop.permute.xlu0 %106
    %108 = vrot.lane.b32.xlu0 %v55, 126
    %v109 = vpop.permute.xlu0 %108
    %v116 = vadd.f32 %v86, %v99
    %v117 = vadd.f32 %v87, %v101
    %v118 = vadd.f32 %v88, %v103
    %v119 = vadd.f32 %v89, %v105
    %v120 = vadd.f32 %v90, %v107
    %v121 = vadd.f32 %v91, %v109
    %v122 = vmul.f32 %v116, 0.006648354
    %v123 = vmul.f32 %v117, 0.006648354
    %v124 = vmul.f32 %v118, 0.006648354
    %v125 = vmul.f32 %v119, 0.006648354
    %v126 = vmul.f32 %v120, 0.006648354
    %v127 = vmul.f32 %v121, 0.006648354
    %v128 = vmul.f32 %v116, 0.9867033
    %v129 = vmul.f32 %v117, 0.9867033
    %v130 = vmul.f32 %v118, 0.9867033
    %v131 = vmul.f32 %v119, 0.9867033
    %v132 = vmul.f32 %v120, 0.9867033
    %v133 = vmul.f32 %v121, 0.9867033
    %vm140 = vcmask 1046528
    %v141 = vrot.slane %v128, 1
    %v142 = vrot.slane %v129, 1
    %v143 = vsel %vm140, %v141, %v142
    %v144 = vrot.slane %v130, 1
    %v145 = vsel %vm140, %v142, %v144
    %v146 = vrot.slane %v131, 1
    %v147 = vrot.slane %v132, 1
    %v148 = vsel %vm140, %v146, %v147
    %v149 = vrot.slane %v133, 1
    %v150 = vsel %vm140, %v147, %v149
    %v157 = vadd.f32 %v122, %v143
    %v158 = vadd.f32 %v123, %v145
    %v159 = vadd.f32 %v124, %v144
    %v160 = vadd.f32 %v125, %v148
    %v161 = vadd.f32 %v126, %v150
    %v162 = vadd.f32 %v127, %v149
    %vm169 = vcmask 1045504
    %v170 = vrot.slane %v122, 2
    %v171 = vrot.slane %v123, 2
    %v172 = vsel %vm169, %v170, %v171
    %v173 = vrot.slane %v124, 2
    %v174 = vsel %vm169, %v171, %v173
    %v175 = vrot.slane %v125, 2
    %v176 = vrot.slane %v126, 2
    %v177 = vsel %vm169, %v175, %v176
    %v178 = vrot.slane %v127, 2
    %v179 = vsel %vm169, %v176, %v178
    %v186 = vadd.f32 %v157, %v172
    %v187 = vadd.f32 %v158, %v174
    %v188 = vadd.f32 %v159, %v173
    %v189 = vadd.f32 %v160, %v177
    %v190 = vadd.f32 %v161, %v179
    %v191 = vadd.f32 %v162, %v178
    %198 = vrot.lane.b32.xlu0 %v186, 124
    %v199 = vpop.permute.xlu0 %198
    %200 = vrot.lane.b32.xlu0 %v187, 124
    %v201 = vpop.permute.xlu0 %200
    %202 = vrot.lane.b32.xlu0 %v188, 124
    %v203 = vpop.permute.xlu0 %202
    %204 = vrot.lane.b32.xlu0 %v189, 124
    %v205 = vpop.permute.xlu0 %204
    %206 = vrot.lane.b32.xlu0 %v190, 124
    %v207 = vpop.permute.xlu0 %206
    %208 = vrot.lane.b32.xlu0 %v191, 124
    %v209 = vpop.permute.xlu0 %208
    %s216 = scalar_lea.vmem [#allocation2], 16
    %vm217 = vcmask 130052
    %218 = vst.msk [vmem:[%s216 - $0x4] sm:$0xf0] %vm217, %v199
    %219 = vst.msk [vmem:[%s216 + $0x4] sm:$0xff] %vm43, %v201
    %vm220 = vcmask 125952
    %221 = vst.msk [vmem:[%s216 + $0xc] sm:$0xf] %vm220, %v203
    %222 = vst.msk [vmem:[%s216 + $0x4c] sm:$0xf0] %vm217, %v205
    %223 = vst.msk [vmem:[%s216 + $0x54] sm:$0xff] %vm43, %v207
    %224 = vst.msk [vmem:[%s216 + $0x5c] sm:$0xf] %vm220, %v209
    %v225 = vmul.f32 %v9, 1.4867195e-06
    %v226 = vmul.f32 %v10, 1.4867195e-06
    %v227 = vmul.f32 %v11, 1.4867195e-06
    %v228 = vmul.f32 %v12, 1.4867195e-06
    %v229 = vmul.f32 %v13, 1.4867195e-06
    %v230 = vmul.f32 %v14, 1.4867195e-06
    %v231 = vmul.f32 %v15, 1.4867195e-06
    %v232 = vmul.f32 %v16, 1.4867195e-06
    %v233 = vmul.f32 %v9, 0.00013383022
    %v234 = vmul.f32 %v10, 0.00013383022
    %v235 = vmul.f32 %v11, 0.00013383022
    %v236 = vmul.f32 %v12, 0.00013383022
    %v237 = vmul.f32 %v13, 0.00013383022
    %v238 = vmul.f32 %v14, 0.00013383022
    %v239 = vmul.f32 %v15, 0.00013383022
    %v240 = vmul.f32 %v16, 0.00013383022
    %249 = vrot.lane.b32.xlu0 %v233, 127
    %v250 = vpop.permute.xlu0 %249
    %251 = vrot.lane.b32.xlu0 %v234, 127
    %v252 = vpop.permute.xlu0 %251
    %253 = vrot.lane.b32.xlu0 %v235, 127
    %v254 = vpop.permute.xlu0 %253
    %255 = vrot.lane.b32.xlu0 %v236, 127
    %v256 = vpop.permute.xlu0 %255
    %257 = vrot.lane.b32.xlu0 %v237, 127
    %v258 = vpop.permute.xlu0 %257
    %259 = vrot.lane.b32.xlu0 %v238, 127
    %v260 = vpop.permute.xlu0 %259
    %261 = vrot.lane.b32.xlu0 %v239, 127
    %v262 = vpop.permute.xlu0 %261
    %263 = vrot.lane.b32.xlu0 %v240, 127
    %v264 = vpop.permute.xlu0 %263
    %v273 = vadd.f32 %v225, %v250
    %v274 = vadd.f32 %v226, %v252
    %v275 = vadd.f32 %v227, %v254
    %v276 = vadd.f32 %v228, %v256
    %v277 = vadd.f32 %v229, %v258
    %v278 = vadd.f32 %v230, %v260
    %v279 = vadd.f32 %v231, %v262
    %v280 = vadd.f32 %v232, %v264
    %v281 = vmul.f32 %v9, 0.0044318484
    %v282 = vmul.f32 %v10, 0.0044318484
    %v283 = vmul.f32 %v11, 0.0044318484
    %v284 = vmul.f32 %v12, 0.0044318484
    %v285 = vmul.f32 %v13, 0.0044318484
    %v286 = vmul.f32 %v14, 0.0044318484
    %v287 = vmul.f32 %v15, 0.0044318484
    %v288 = vmul.f32 %v16, 0.0044318484
    %297 = vrot.lane.b32.xlu0 %v281, 126
    %v298 = vpop.permute.xlu0 %297
    %299 = vrot.lane.b32.xlu0 %v282, 126
    %v300 = vpop.permute.xlu0 %299
    %301 = vrot.lane.b32.xlu0 %v283, 126
    %v302 = vpop.permute.xlu0 %301
    %303 = vrot.lane.b32.xlu0 %v284, 126
    %v304 = vpop.permute.xlu0 %303
    %305 = vrot.lane.b32.xlu0 %v285, 126
    %v306 = vpop.permute.xlu0 %305
    %307 = vrot.lane.b32.xlu0 %v286, 126
    %v308 = vpop.permute.xlu0 %307
    %309 = vrot.lane.b32.xlu0 %v287, 126
    %v310 = vpop.permute.xlu0 %309
    %311 = vrot.lane.b32.xlu0 %v288, 126
    %v312 = vpop.permute.xlu0 %311
    %v321 = vadd.f32 %v273, %v298
    %v322 = vadd.f32 %v274, %v300
    %v323 = vadd.f32 %v275, %v302
    %v324 = vadd.f32 %v276, %v304
    %v325 = vadd.f32 %v277, %v306
    %v326 = vadd.f32 %v278, %v308
    %v327 = vadd.f32 %v279, %v310
    %v328 = vadd.f32 %v280, %v312
    %v329 = vmul.f32 %v9, 0.053990968
    %v330 = vmul.f32 %v10, 0.053990968
    %v331 = vmul.f32 %v11, 0.053990968
    %v332 = vmul.f32 %v12, 0.053990968
    %v333 = vmul.f32 %v13, 0.053990968
    %v334 = vmul.f32 %v14, 0.053990968
    %v335 = vmul.f32 %v15, 0.053990968
    %v336 = vmul.f32 %v16, 0.053990968
    %345 = vrot.lane.b32.xlu0 %v329, 125
    %v346 = vpop.permute.xlu0 %345
    %347 = vrot.lane.b32.xlu0 %v330, 125
    %v348 = vpop.permute.xlu0 %347
    %349 = vrot.lane.b32.xlu0 %v331, 125
    %v350 = vpop.permute.xlu0 %349
    %351 = vrot.lane.b32.xlu0 %v332, 125
    %v352 = vpop.permute.xlu0 %351
    %353 = vrot.lane.b32.xlu0 %v333, 125
    %v354 = vpop.permute.xlu0 %353
    %355 = vrot.lane.b32.xlu0 %v334, 125
    %v356 = vpop.permute.xlu0 %355
    %357 = vrot.lane.b32.xlu0 %v335, 125
    %v358 = vpop.permute.xlu0 %357
    %359 = vrot.lane.b32.xlu0 %v336, 125
    %v360 = vpop.permute.xlu0 %359
    %v369 = vadd.f32 %v321, %v346
    %v370 = vadd.f32 %v322, %v348
    %v371 = vadd.f32 %v323, %v350
    %v372 = vadd.f32 %v324, %v352
    %v373 = vadd.f32 %v325, %v354
    %v374 = vadd.f32 %v326, %v356
    %v375 = vadd.f32 %v327, %v358
    %v376 = vadd.f32 %v328, %v360
    %v377 = vmul.f32 %v9, 0.24197073
    %v378 = vmul.f32 %v10, 0.24197073
    %v379 = vmul.f32 %v11, 0.24197073
    %v380 = vmul.f32 %v12, 0.24197073
    %v381 = vmul.f32 %v13, 0.24197073
    %v382 = vmul.f32 %v14, 0.24197073
    %v383 = vmul.f32 %v15, 0.24197073
    %v384 = vmul.f32 %v16, 0.24197073
    %393 = vrot.lane.b32.xlu0 %v377, 124
    %v394 = vpop.permute.xlu0 %393
    %395 = vrot.lane.b32.xlu0 %v378, 124
    %v396 = vpop.permute.xlu0 %395
    %397 = vrot.lane.b32.xlu0 %v379, 124
    %v398 = vpop.permute.xlu0 %397
    %399 = vrot.lane.b32.xlu0 %v380, 124
    %v400 = vpop.permute.xlu0 %399
    %401 = vrot.lane.b32.xlu0 %v381, 124
    %v402 = vpop.permute.xlu0 %401
    %403 = vrot.lane.b32.xlu0 %v382, 124
    %v404 = vpop.permute.xlu0 %403
    %405 = vrot.lane.b32.xlu0 %v383, 124
    %v406 = vpop.permute.xlu0 %405
    %407 = vrot.lane.b32.xlu0 %v384, 124
    %v408 = vpop.permute.xlu0 %407
    %v417 = vadd.f32 %v369, %v394
    %v418 = vadd.f32 %v370, %v396
    %v419 = vadd.f32 %v371, %v398
    %v420 = vadd.f32 %v372, %v400
    %v421 = vadd.f32 %v373, %v402
    %v422 = vadd.f32 %v374, %v404
    %v423 = vadd.f32 %v375, %v406
    %v424 = vadd.f32 %v376, %v408
    %v425 = vmul.f32 %v9, 0.3989423
    %v426 = vmul.f32 %v10, 0.3989423
    %v427 = vmul.f32 %v11, 0.3989423
    %v428 = vmul.f32 %v12, 0.3989423
    %v429 = vmul.f32 %v13, 0.3989423
    %v430 = vmul.f32 %v14, 0.3989423
    %v431 = vmul.f32 %v15, 0.3989423
    %v432 = vmul.f32 %v16, 0.3989423
    %441 = vrot.lane.b32.xlu0 %v425, 123
    %v442 = vpop.permute.xlu0 %441
    %443 = vrot.lane.b32.xlu0 %v426, 123
    %v444 = vpop.permute.xlu0 %443
    %445 = vrot.lane.b32.xlu0 %v427, 123
    %v446 = vpop.permute.xlu0 %445
    %447 = vrot.lane.b32.xlu0 %v428, 123
    %v448 = vpop.permute.xlu0 %447
    %449 = vrot.lane.b32.xlu0 %v429, 123
    %v450 = vpop.permute.xlu0 %449
    %451 = vrot.lane.b32.xlu0 %v430, 123
    %v452 = vpop.permute.xlu0 %451
    %453 = vrot.lane.b32.xlu0 %v431, 123
    %v454 = vpop.permute.xlu0 %453
    %455 = vrot.lane.b32.xlu0 %v432, 123
    %v456 = vpop.permute.xlu0 %455
    %v465 = vadd.f32 %v417, %v442
    %v466 = vadd.f32 %v418, %v444
    %v467 = vadd.f32 %v419, %v446
    %v468 = vadd.f32 %v420, %v448
    %v469 = vadd.f32 %v421, %v450
    %v470 = vadd.f32 %v422, %v452
    %v471 = vadd.f32 %v423, %v454
    %v472 = vadd.f32 %v424, %v456
    %473 = vrot.lane.b32.xlu0 %v377, 122
    %v474 = vpop.permute.xlu0 %473
    %475 = vrot.lane.b32.xlu0 %v378, 122
    %v476 = vpop.permute.xlu0 %475
    %477 = vrot.lane.b32.xlu0 %v379, 122
    %v478 = vpop.permute.xlu0 %477
    %479 = vrot.lane.b32.xlu0 %v380, 122
    %v480 = vpop.permute.xlu0 %479
    %481 = vrot.lane.b32.xlu0 %v381, 122
    %v482 = vpop.permute.xlu0 %481
    %483 = vrot.lane.b32.xlu0 %v382, 122
    %v484 = vpop.permute.xlu0 %483
    %485 = vrot.lane.b32.xlu0 %v383, 122
    %v486 = vpop.permute.xlu0 %485
    %487 = vrot.lane.b32.xlu0 %v384, 122
    %v488 = vpop.permute.xlu0 %487
    %v497 = vadd.f32 %v465, %v474
    %v498 = vadd.f32 %v466, %v476
    %v499 = vadd.f32 %v467, %v478
    %v500 = vadd.f32 %v468, %v480
    %v501 = vadd.f32 %v469, %v482
    %v502 = vadd.f32 %v470, %v484
    %v503 = vadd.f32 %v471, %v486
    %v504 = vadd.f32 %v472, %v488
    %505 = vrot.lane.b32.xlu0 %v329, 121
    %v506 = vpop.permute.xlu0 %505
    %507 = vrot.lane.b32.xlu0 %v330, 121
    %v508 = vpop.permute.xlu0 %507
    %509 = vrot.lane.b32.xlu0 %v331, 121
    %v510 = vpop.permute.xlu0 %509
    %511 = vrot.lane.b32.xlu0 %v332, 121
    %v512 = vpop.permute.xlu0 %511
    %513 = vrot.lane.b32.xlu0 %v333, 121
    %v514 = vpop.permute.xlu0 %513
    %515 = vrot.lane.b32.xlu0 %v334, 121
    %v516 = vpop.permute.xlu0 %515
    %517 = vrot.lane.b32.xlu0 %v335, 121
    %v518 = vpop.permute.xlu0 %517
    %519 = vrot.lane.b32.xlu0 %v336, 121
    %v520 = vpop.permute.xlu0 %519
    %v529 = vadd.f32 %v497, %v506
    %v530 = vadd.f32 %v498, %v508
    %v531 = vadd.f32 %v499, %v510
    %v532 = vadd.f32 %v500, %v512
    %v533 = vadd.f32 %v501, %v514
    %v534 = vadd.f32 %v502, %v516
    %v535 = vadd.f32 %v503, %v518
    %v536 = vadd.f32 %v504, %v520
    %537 = vrot.lane.b32.xlu0 %v281, 120
    %v538 = vpop.permute.xlu0 %537
    %539 = vrot.lane.b32.xlu0 %v282, 120
    %v540 = vpop.permute.xlu0 %539
    %541 = vrot.lane.b32.xlu0 %v283, 120
    %v542 = vpop.permute.xlu0 %541
    %543 = vrot.lane.b32.xlu0 %v284, 120
    %v544 = vpop.permute.xlu0 %543
    %545 = vrot.lane.b32.xlu0 %v285, 120
    %v546 = vpop.permute.xlu0 %545
    %547 = vrot.lane.b32.xlu0 %v286, 120
    %v548 = vpop.permute.xlu0 %547
    %549 = vrot.lane.b32.xlu0 %v287, 120
    %v550 = vpop.permute.xlu0 %549
    %551 = vrot.lane.b32.xlu0 %v288, 120
    %v552 = vpop.permute.xlu0 %551
    %v561 = vadd.f32 %v529, %v538
    %v562 = vadd.f32 %v530, %v540
    %v563 = vadd.f32 %v531, %v542
    %v564 = vadd.f32 %v532, %v544
    %v565 = vadd.f32 %v533, %v546
    %v566 = vadd.f32 %v534, %v548
    %v567 = vadd.f32 %v535, %v550
    %v568 = vadd.f32 %v536, %v552
    %569 = vrot.lane.b32.xlu0 %v233, 119
    %v570 = vpop.permute.xlu0 %569
    %571 = vrot.lane.b32.xlu0 %v234, 119
    %v572 = vpop.permute.xlu0 %571
    %573 = vrot.lane.b32.xlu0 %v235, 119
    %v574 = vpop.permute.xlu0 %573
    %575 = vrot.lane.b32.xlu0 %v236, 119
    %v576 = vpop.permute.xlu0 %575
    %577 = vrot.lane.b32.xlu0 %v237, 119
    %v578 = vpop.permute.xlu0 %577
    %579 = vrot.lane.b32.xlu0 %v238, 119
    %v580 = vpop.permute.xlu0 %579
    %581 = vrot.lane.b32.xlu0 %v239, 119
    %v582 = vpop.permute.xlu0 %581
    %583 = vrot.lane.b32.xlu0 %v240, 119
    %v584 = vpop.permute.xlu0 %583
    %v593 = vadd.f32 %v561, %v570
    %v594 = vadd.f32 %v562, %v572
    %v595 = vadd.f32 %v563, %v574
    %v596 = vadd.f32 %v564, %v576
    %v597 = vadd.f32 %v565, %v578
    %v598 = vadd.f32 %v566, %v580
    %v599 = vadd.f32 %v567, %v582
    %v600 = vadd.f32 %v568, %v584
    %609 = vrot.lane.b32.xlu0 %v225, 118
    %v610 = vpop.permute.xlu0 %609
    %611 = vrot.lane.b32.xlu0 %v226, 118
    %v612 = vpop.permute.xlu0 %611
    %613 = vrot.lane.b32.xlu0 %v227, 118
    %v614 = vpop.permute.xlu0 %613
    %615 = vrot.lane.b32.xlu0 %v228, 118
    %v616 = vpop.permute.xlu0 %615
    %617 = vrot.lane.b32.xlu0 %v229, 118
    %v618 = vpop.permute.xlu0 %617
    %619 = vrot.lane.b32.xlu0 %v230, 118
    %v620 = vpop.permute.xlu0 %619
    %621 = vrot.lane.b32.xlu0 %v231, 118
    %v622 = vpop.permute.xlu0 %621
    %623 = vrot.lane.b32.xlu0 %v232, 118
    %v624 = vpop.permute.xlu0 %623
    %v633 = vadd.f32 %v593, %v610
    %v634 = vadd.f32 %v594, %v612
    %v635 = vadd.f32 %v595, %v614
    %v636 = vadd.f32 %v596, %v616
    %v637 = vadd.f32 %v597, %v618
    %v638 = vadd.f32 %v598, %v620
    %v639 = vadd.f32 %v599, %v622
    %v640 = vadd.f32 %v600, %v624
    %v641 = vmul.f32 %v633, 1.4867195e-06
    %v642 = vmul.f32 %v634, 1.4867195e-06
    %v643 = vmul.f32 %v637, 1.4867195e-06
    %v644 = vmul.f32 %v638, 1.4867195e-06
    %v645 = vmul.f32 %v633, 0.00013383022
    %v646 = vmul.f32 %v634, 0.00013383022
    %v647 = vmul.f32 %v635, 0.00013383022
    %v648 = vmul.f32 %v637, 0.00013383022
    %v649 = vmul.f32 %v638, 0.00013383022
    %v650 = vmul.f32 %v639, 0.00013383022
    %v657 = vrot.slane %v645, 1
    %v658 = vrot.slane %v646, 1
    %v659 = vsel %vm140, %v657, %v658
    %v660 = vrot.slane %v647, 1
    %v661 = vsel %vm140, %v658, %v660
    %v662 = vrot.slane %v648, 1
    %v663 = vrot.slane %v649, 1
    %v664 = vsel %vm140, %v662, %v663
    %v665 = vrot.slane %v650, 1
    %v666 = vsel %vm140, %v663, %v665
    %v671 = vadd.f32 %v641, %v659
    %v672 = vadd.f32 %v642, %v661
    %v673 = vadd.f32 %v643, %v664
    %v674 = vadd.f32 %v644, %v666
    %v675 = vmul.f32 %v633, 0.0044318484
    %v676 = vmul.f32 %v634, 0.0044318484
    %v677 = vmul.f32 %v635, 0.0044318484
    %v678 = vmul.f32 %v637, 0.0044318484
    %v679 = vmul.f32 %v638, 0.0044318484
    %v680 = vmul.f32 %v639, 0.0044318484
    %v687 = vrot.slane %v675, 2
    %v688 = vrot.slane %v676, 2
    %v689 = vsel %vm169, %v687, %v688
    %v690 = vrot.slane %v677, 2
    %v691 = vsel %vm169, %v688, %v690
    %v692 = vrot.slane %v678, 2
    %v693 = vrot.slane %v679, 2
    %v694 = vsel %vm169, %v692, %v693
    %v695 = vrot.slane %v680, 2
    %v696 = vsel %vm169, %v693, %v695
    %v701 = vadd.f32 %v671, %v689
    %v702 = vadd.f32 %v672, %v691
    %v703 = vadd.f32 %v673, %v694
    %v704 = vadd.f32 %v674, %v696
    %v705 = vmul.f32 %v633, 0.053990968
    %v706 = vmul.f32 %v634, 0.053990968
    %v707 = vmul.f32 %v635, 0.053990968
    %v708 = vmul.f32 %v637, 0.053990968
    %v709 = vmul.f32 %v638, 0.053990968
    %v710 = vmul.f32 %v639, 0.053990968
    %vm717 = vcmask 1044480
    %v718 = vrot.slane %v705, 3
    %v719 = vrot.slane %v706, 3
    %v720 = vsel %vm717, %v718, %v719
    %v721 = vrot.slane %v707, 3
    %v722 = vsel %vm717, %v719, %v721
    %v723 = vrot.slane %v708, 3
    %v724 = vrot.slane %v709, 3
    %v725 = vsel %vm717, %v723, %v724
    %v726 = vrot.slane %v710, 3
    %v727 = vsel %vm717, %v724, %v726
    %v732 = vadd.f32 %v701, %v720
    %v733 = vadd.f32 %v702, %v722
    %v734 = vadd.f32 %v703, %v725
    %v735 = vadd.f32 %v704, %v727
    %v736 = vmul.f32 %v633, 0.24197073
    %v737 = vmul.f32 %v634, 0.24197073
    %v738 = vmul.f32 %v635, 0.24197073
    %v739 = vmul.f32 %v637, 0.24197073
    %v740 = vmul.f32 %v638, 0.24197073
    %v741 = vmul.f32 %v639, 0.24197073
    %vm748 = vcmask 1043456
    %v749 = vrot.slane %v736, 4
    %v750 = vrot.slane %v737, 4
    %v751 = vsel %vm748, %v749, %v750
    %v752 = vrot.slane %v738, 4
    %v753 = vsel %vm748, %v750, %v752
    %v754 = vrot.slane %v739, 4
    %v755 = vrot.slane %v740, 4
    %v756 = vsel %vm748, %v754, %v755
    %v757 = vrot.slane %v741, 4
    %v758 = vsel %vm748, %v755, %v757
    %v763 = vadd.f32 %v732, %v751
    %v764 = vadd.f32 %v733, %v753
    %v765 = vadd.f32 %v734, %v756
    %v766 = vadd.f32 %v735, %v758
    %v767 = vmul.f32 %v633, 0.3989423
    %v768 = vmul.f32 %v634, 0.3989423
    %v769 = vmul.f32 %v635, 0.3989423
    %v770 = vmul.f32 %v637, 0.3989423
    %v771 = vmul.f32 %v638, 0.3989423
    %v772 = vmul.f32 %v639, 0.3989423
    %vm779 = vcmask 1042432
    %v780 = vrot.slane %v767, 5
    %v781 = vrot.slane %v768, 5
    %v782 = vsel %vm779, %v780, %v781
    %v783 = vrot.slane %v769, 5
    %v784 = vsel %vm779, %v781, %v783
    %v785 = vrot.slane %v770, 5
    %v786 = vrot.slane %v771, 5
    %v787 = vsel %vm779, %v785, %v786
    %v788 = vrot.slane %v772, 5
    %v789 = vsel %vm779, %v786, %v788
    %v794 = vadd.f32 %v763, %v782
    %v795 = vadd.f32 %v764, %v784
    %v796 = vadd.f32 %v765, %v787
    %v797 = vadd.f32 %v766, %v789
    %vm798 = vcmask 1041408
    %v799 = vrot.slane %v736, 6
    %v800 = vrot.slane %v737, 6
    %v801 = vsel %vm798, %v799, %v800
    %v802 = vrot.slane %v738, 6
    %v803 = vsel %vm798, %v800, %v802
    %v804 = vrot.slane %v739, 6
    %v805 = vrot.slane %v740, 6
    %v806 = vsel %vm798, %v804, %v805
    %v807 = vrot.slane %v741, 6
    %v808 = vsel %vm798, %v805, %v807
    %v813 = vadd.f32 %v794, %v801
    %v814 = vadd.f32 %v795, %v803
    %v815 = vadd.f32 %v796, %v806
    %v816 = vadd.f32 %v797, %v808
    %vm817 = vcmask 1040384
    %v818 = vrot.slane %v705, 7
    %v819 = vrot.slane %v706, 7
    %v820 = vsel %vm817, %v818, %v819
    %v821 = vrot.slane %v707, 7
    %v822 = vsel %vm817, %v819, %v821
    %v823 = vrot.slane %v708, 7
    %v824 = vrot.slane %v709, 7
    %v825 = vsel %vm817, %v823, %v824
    %v826 = vrot.slane %v710, 7
    %v827 = vsel %vm817, %v824, %v826
    %v832 = vadd.f32 %v813, %v820
    %v833 = vadd.f32 %v814, %v822
    %v834 = vadd.f32 %v815, %v825
    %v835 = vadd.f32 %v816, %v827
    %v836 = vadd.f32 %v832, %v676
    %v837 = vadd.f32 %v833, %v677
    %v838 = vadd.f32 %v834, %v679
    %v839 = vadd.f32 %v835, %v680
    %v840 = vmul.f32 %v636, 0.00013383022
    %v841 = vmul.f32 %v640, 0.00013383022
    %v844 = vrot.slane %v840, 1
    %v845 = vsel %vm140, %v660, %v844
    %v846 = vrot.slane %v841, 1
    %v847 = vsel %vm140, %v665, %v846
    %v850 = vadd.f32 %v836, %v661
    %v851 = vadd.f32 %v837, %v845
    %v852 = vadd.f32 %v838, %v666
    %v853 = vadd.f32 %v839, %v847
    %v854 = vmul.f32 %v635, 1.4867195e-06
    %v855 = vmul.f32 %v636, 1.4867195e-06
    %v856 = vmul.f32 %v639, 1.4867195e-06
    %v857 = vmul.f32 %v640, 1.4867195e-06
    %v864 = vrot.slane %v642, 2
    %v865 = vrot.slane %v854, 2
    %v866 = vsel %vm169, %v864, %v865
    %v867 = vrot.slane %v855, 2
    %v868 = vsel %vm169, %v865, %v867
    %v869 = vrot.slane %v644, 2
    %v870 = vrot.slane %v856, 2
    %v871 = vsel %vm169, %v869, %v870
    %v872 = vrot.slane %v857, 2
    %v873 = vsel %vm169, %v870, %v872
    %v878 = vadd.f32 %v850, %v866
    %v879 = vadd.f32 %v851, %v868
    %v880 = vadd.f32 %v852, %v871
    %v881 = vadd.f32 %v853, %v873
    %s882 = scalar_lea.vmem [#allocation2], 32
    %883 = vst.msk [vmem:[%s882] sm:$0xff] %vm43, %v878
    %884 = vst.msk [vmem:[%s882 + $0x8] sm:$0xff] %vm43, %v879
    %885 = vst.msk [vmem:[%s882 + $0x50] sm:$0xff] %vm43, %v880
    %886 = vst.msk [vmem:[%s882 + $0x58] sm:$0xff] %vm43, %v881
    %v887 = vmul.f32 %v9, 0.03931809
    %v888 = vmul.f32 %v10, 0.03931809
    %v889 = vmul.f32 %v11, 0.03931809
    %v890 = vmul.f32 %v12, 0.03931809
    %v891 = vmul.f32 %v13, 0.03931809
    %v892 = vmul.f32 %v14, 0.03931809
    %v893 = vmul.f32 %v15, 0.03931809
    %v894 = vmul.f32 %v16, 0.03931809
    %v895 = vmul.f32 %v9, 0.06166304
    %v896 = vmul.f32 %v10, 0.06166304
    %v897 = vmul.f32 %v11, 0.06166304
    %v898 = vmul.f32 %v12, 0.06166304
    %v899 = vmul.f32 %v13, 0.06166304
    %v900 = vmul.f32 %v14, 0.06166304
    %v901 = vmul.f32 %v15, 0.06166304
    %v902 = vmul.f32 %v16, 0.06166304
    %911 = vrot.lane.b32.xlu0 %v895, 127
    %v912 = vpop.permute.xlu0 %911
    %913 = vrot.lane.b32.xlu0 %v896, 127
    %v914 = vpop.permute.xlu0 %913
    %915 = vrot.lane.b32.xlu0 %v897, 127
    %v916 = vpop.permute.xlu0 %915
    %917 = vrot.lane.b32.xlu0 %v898, 127
    %v918 = vpop.permute.xlu0 %917
    %919 = vrot.lane.b32.xlu0 %v899, 127
    %v920 = vpop.permute.xlu0 %919
    %921 = vrot.lane.b32.xlu0 %v900, 127
    %v922 = vpop.permute.xlu0 %921
    %923 = vrot.lane.b32.xlu0 %v901, 127
    %v924 = vpop.permute.xlu0 %923
    %925 = vrot.lane.b32.xlu0 %v902, 127
    %v926 = vpop.permute.xlu0 %925
    %v935 = vadd.f32 %v887, %v912
    %v936 = vadd.f32 %v888, %v914
    %v937 = vadd.f32 %v889, %v916
    %v938 = vadd.f32 %v890, %v918
    %v939 = vadd.f32 %v891, %v920
    %v940 = vadd.f32 %v892, %v922
    %v941 = vadd.f32 %v893, %v924
    %v942 = vadd.f32 %v894, %v926
    %v943 = vmul.f32 %v9, 0.08750402
    %v944 = vmul.f32 %v10, 0.08750402
    %v945 = vmul.f32 %v11, 0.08750402
    %v946 = vmul.f32 %v12, 0.08750402
    %v947 = vmul.f32 %v13, 0.08750402
    %v948 = vmul.f32 %v14, 0.08750402
    %v949 = vmul.f32 %v15, 0.08750402
    %v950 = vmul.f32 %v16, 0.08750402
    %959 = vrot.lane.b32.xlu0 %v943, 126
    %v960 = vpop.permute.xlu0 %959
    %961 = vrot.lane.b32.xlu0 %v944, 126
    %v962 = vpop.permute.xlu0 %961
    %963 = vrot.lane.b32.xlu0 %v945, 126
    %v964 = vpop.permute.xlu0 %963
    %965 = vrot.lane.b32.xlu0 %v946, 126
    %v966 = vpop.permute.xlu0 %965
    %967 = vrot.lane.b32.xlu0 %v947, 126
    %v968 = vpop.permute.xlu0 %967
    %969 = vrot.lane.b32.xlu0 %v948, 126
    %v970 = vpop.permute.xlu0 %969
    %971 = vrot.lane.b32.xlu0 %v949, 126
    %v972 = vpop.permute.xlu0 %971
    %973 = vrot.lane.b32.xlu0 %v950, 126
    %v974 = vpop.permute.xlu0 %973
    %v983 = vadd.f32 %v935, %v960
    %v984 = vadd.f32 %v936, %v962
    %v985 = vadd.f32 %v937, %v964
    %v986 = vadd.f32 %v938, %v966
    %v987 = vadd.f32 %v939, %v968
    %v988 = vadd.f32 %v940, %v970
    %v989 = vadd.f32 %v941, %v972
    %v990 = vadd.f32 %v942, %v974
    %v991 = vmul.f32 %v9, 0.112357385
    %v992 = vmul.f32 %v10, 0.112357385
    %v993 = vmul.f32 %v11, 0.112357385
    %v994 = vmul.f32 %v12, 0.112357385
    %v995 = vmul.f32 %v13, 0.112357385
    %v996 = vmul.f32 %v14, 0.112357385
    %v997 = vmul.f32 %v15, 0.112357385
    %v998 = vmul.f32 %v16, 0.112357385
    %1007 = vrot.lane.b32.xlu0 %v991, 125
    %v1008 = vpop.permute.xlu0 %1007
    %1009 = vrot.lane.b32.xlu0 %v992, 125
    %v1010 = vpop.permute.xlu0 %1009
    %1011 = vrot.lane.b32.xlu0 %v993, 125
    %v1012 = vpop.permute.xlu0 %1011
    %1013 = vrot.lane.b32.xlu0 %v994, 125
    %v1014 = vpop.permute.xlu0 %1013
    %1015 = vrot.lane.b32.xlu0 %v995, 125
    %v1016 = vpop.permute.xlu0 %1015
    %1017 = vrot.lane.b32.xlu0 %v996, 125
    %v1018 = vpop.permute.xlu0 %1017
    %1019 = vrot.lane.b32.xlu0 %v997, 125
    %v1020 = vpop.permute.xlu0 %1019
    %1021 = vrot.lane.b32.xlu0 %v998, 125
    %v1022 = vpop.permute.xlu0 %1021
    %v1031 = vadd.f32 %v983, %v1008
    %v1032 = vadd.f32 %v984, %v1010
    %v1033 = vadd.f32 %v985, %v1012
    %v1034 = vadd.f32 %v986, %v1014
    %v1035 = vadd.f32 %v987, %v1016
    %v1036 = vadd.f32 %v988, %v1018
    %v1037 = vadd.f32 %v989, %v1020
    %v1038 = vadd.f32 %v990, %v1022
    %v1039 = vmul.f32 %v9, 0.13054065
    %v1040 = vmul.f32 %v10, 0.13054065
    %v1041 = vmul.f32 %v11, 0.13054065
    %v1042 = vmul.f32 %v12, 0.13054065
    %v1043 = vmul.f32 %v13, 0.13054065
    %v1044 = vmul.f32 %v14, 0.13054065
    %v1045 = vmul.f32 %v15, 0.13054065
    %v1046 = vmul.f32 %v16, 0.13054065
    %1055 = vrot.lane.b32.xlu0 %v1039, 124
    %v1056 = vpop.permute.xlu0 %1055
    %1057 = vrot.lane.b32.xlu0 %v1040, 124
    %v1058 = vpop.permute.xlu0 %1057
    %1059 = vrot.lane.b32.xlu0 %v1041, 124
    %v1060 = vpop.permute.xlu0 %1059
    %1061 = vrot.lane.b32.xlu0 %v1042, 124
    %v1062 = vpop.permute.xlu0 %1061
    %1063 = vrot.lane.b32.xlu0 %v1043, 124
    %v1064 = vpop.permute.xlu0 %1063
    %1065 = vrot.lane.b32.xlu0 %v1044, 124
    %v1066 = vpop.permute.xlu0 %1065
    %1067 = vrot.lane.b32.xlu0 %v1045, 124
    %v1068 = vpop.permute.xlu0 %1067
    %1069 = vrot.lane.b32.xlu0 %v1046, 124
    %v1070 = vpop.permute.xlu0 %1069
    %v1079 = vadd.f32 %v1031, %v1056
    %v1080 = vadd.f32 %v1032, %v1058
    %v1081 = vadd.f32 %v1033, %v1060
    %v1082 = vadd.f32 %v1034, %v1062
    %v1083 = vadd.f32 %v1035, %v1064
    %v1084 = vadd.f32 %v1036, %v1066
    %v1085 = vadd.f32 %v1037, %v1068
    %v1086 = vadd.f32 %v1038, %v1070
    %v1087 = vmul.f32 %v9, 0.13723361
    %v1088 = vmul.f32 %v10, 0.13723361
    %v1089 = vmul.f32 %v11, 0.13723361
    %v1090 = vmul.f32 %v12, 0.13723361
    %v1091 = vmul.f32 %v13, 0.13723361
    %v1092 = vmul.f32 %v14, 0.13723361
    %v1093 = vmul.f32 %v15, 0.13723361
    %v1094 = vmul.f32 %v16, 0.13723361
    %1103 = vrot.lane.b32.xlu0 %v1087, 123
    %v1104 = vpop.permute.xlu0 %1103
    %1105 = vrot.lane.b32.xlu0 %v1088, 123
    %v1106 = vpop.permute.xlu0 %1105
    %1107 = vrot.lane.b32.xlu0 %v1089, 123
    %v1108 = vpop.permute.xlu0 %1107
    %1109 = vrot.lane.b32.xlu0 %v1090, 123
    %v1110 = vpop.permute.xlu0 %1109
    %1111 = vrot.lane.b32.xlu0 %v1091, 123
    %v1112 = vpop.permute.xlu0 %1111
    %1113 = vrot.lane.b32.xlu0 %v1092, 123
    %v1114 = vpop.permute.xlu0 %1113
    %1115 = vrot.lane.b32.xlu0 %v1093, 123
    %v1116 = vpop.permute.xlu0 %1115
    %1117 = vrot.lane.b32.xlu0 %v1094, 123
    %v1118 = vpop.permute.xlu0 %1117
    %v1127 = vadd.f32 %v1079, %v1104
    %v1128 = vadd.f32 %v1080, %v1106
    %v1129 = vadd.f32 %v1081, %v1108
    %v1130 = vadd.f32 %v1082, %v1110
    %v1131 = vadd.f32 %v1083, %v1112
    %v1132 = vadd.f32 %v1084, %v1114
    %v1133 = vadd.f32 %v1085, %v1116
    %v1134 = vadd.f32 %v1086, %v1118
    %1135 = vrot.lane.b32.xlu0 %v1039, 122
    %v1136 = vpop.permute.xlu0 %1135
    %1137 = vrot.lane.b32.xlu0 %v1040, 122
    %v1138 = vpop.permute.xlu0 %1137
    %1139 = vrot.lane.b32.xlu0 %v1041, 122
    %v1140 = vpop.permute.xlu0 %1139
    %1141 = vrot.lane.b32.xlu0 %v1042, 122
    %v1142 = vpop.permute.xlu0 %1141
    %1143 = vrot.lane.b32.xlu0 %v1043, 122
    %v1144 = vpop.permute.xlu0 %1143
    %1145 = vrot.lane.b32.xlu0 %v1044, 122
    %v1146 = vpop.permute.xlu0 %1145
    %1147 = vrot.lane.b32.xlu0 %v1045, 122
    %v1148 = vpop.permute.xlu0 %1147
    %1149 = vrot.lane.b32.xlu0 %v1046, 122
    %v1150 = vpop.permute.xlu0 %1149
    %v1159 = vadd.f32 %v1127, %v1136
    %v1160 = vadd.f32 %v1128, %v1138
    %v1161 = vadd.f32 %v1129, %v1140
    %v1162 = vadd.f32 %v1130, %v1142
    %v1163 = vadd.f32 %v1131, %v1144
    %v1164 = vadd.f32 %v1132, %v1146
    %v1165 = vadd.f32 %v1133, %v1148
    %v1166 = vadd.f32 %v1134, %v1150
    %1167 = vrot.lane.b32.xlu0 %v991, 121
    %v1168 = vpop.permute.xlu0 %1167
    %1169 = vrot.lane.b32.xlu0 %v992, 121
    %v1170 = vpop.permute.xlu0 %1169
    %1171 = vrot.lane.b32.xlu0 %v993, 121
    %v1172 = vpop.permute.xlu0 %1171
    %1173 = vrot.lane.b32.xlu0 %v994, 121
    %v1174 = vpop.permute.xlu0 %1173
    %1175 = vrot.lane.b32.xlu0 %v995, 121
    %v1176 = vpop.permute.xlu0 %1175
    %1177 = vrot.lane.b32.xlu0 %v996, 121
    %v1178 = vpop.permute.xlu0 %1177
    %1179 = vrot.lane.b32.xlu0 %v997, 121
    %v1180 = vpop.permute.xlu0 %1179
    %1181 = vrot.lane.b32.xlu0 %v998, 121
    %v1182 = vpop.permute.xlu0 %1181
    %v1191 = vadd.f32 %v1159, %v1168
    %v1192 = vadd.f32 %v1160, %v1170
    %v1193 = vadd.f32 %v1161, %v1172
    %v1194 = vadd.f32 %v1162, %v1174
    %v1195 = vadd.f32 %v1163, %v1176
    %v1196 = vadd.f32 %v1164, %v1178
    %v1197 = vadd.f32 %v1165, %v1180
    %v1198 = vadd.f32 %v1166, %v1182
    %1199 = vrot.lane.b32.xlu0 %v943, 120
    %v1200 = vpop.permute.xlu0 %1199
    %1201 = vrot.lane.b32.xlu0 %v944, 120
    %v1202 = vpop.permute.xlu0 %1201
    %1203 = vrot.lane.b32.xlu0 %v945, 120
    %v1204 = vpop.permute.xlu0 %1203
    %1205 = vrot.lane.b32.xlu0 %v946, 120
    %v1206 = vpop.permute.xlu0 %1205
    %1207 = vrot.lane.b32.xlu0 %v947, 120
    %v1208 = vpop.permute.xlu0 %1207
    %1209 = vrot.lane.b32.xlu0 %v948, 120
    %v1210 = vpop.permute.xlu0 %1209
    %1211 = vrot.lane.b32.xlu0 %v949, 120
    %v1212 = vpop.permute.xlu0 %1211
    %1213 = vrot.lane.b32.xlu0 %v950, 120
    %v1214 = vpop.permute.xlu0 %1213
    %v1223 = vadd.f32 %v1191, %v1200
    %v1224 = vadd.f32 %v1192, %v1202
    %v1225 = vadd.f32 %v1193, %v1204
    %v1226 = vadd.f32 %v1194, %v1206
    %v1227 = vadd.f32 %v1195, %v1208
    %v1228 = vadd.f32 %v1196, %v1210
    %v1229 = vadd.f32 %v1197, %v1212
    %v1230 = vadd.f32 %v1198, %v1214
    %1231 = vrot.lane.b32.xlu0 %v895, 119
    %v1232 = vpop.permute.xlu0 %1231
    %1233 = vrot.lane.b32.xlu0 %v896, 119
    %v1234 = vpop.permute.xlu0 %1233
    %1235 = vrot.lane.b32.xlu0 %v897, 119
    %v1236 = vpop.permute.xlu0 %1235
    %1237 = vrot.lane.b32.xlu0 %v898, 119
    %v1238 = vpop.permute.xlu0 %1237
    %1239 = vrot.lane.b32.xlu0 %v899, 119
    %v1240 = vpop.permute.xlu0 %1239
    %1241 = vrot.lane.b32.xlu0 %v900, 119
    %v1242 = vpop.permute.xlu0 %1241
    %1243 = vrot.lane.b32.xlu0 %v901, 119
    %v1244 = vpop.permute.xlu0 %1243
    %1245 = vrot.lane.b32.xlu0 %v902, 119
    %v1246 = vpop.permute.xlu0 %1245
    %v1255 = vadd.f32 %v1223, %v1232
    %v1256 = vadd.f32 %v1224, %v1234
    %v1257 = vadd.f32 %v1225, %v1236
    %v1258 = vadd.f32 %v1226, %v1238
    %v1259 = vadd.f32 %v1227, %v1240
    %v1260 = vadd.f32 %v1228, %v1242
    %v1261 = vadd.f32 %v1229, %v1244
    %v1262 = vadd.f32 %v1230, %v1246
    %1271 = vrot.lane.b32.xlu0 %v887, 118
    %v1272 = vpop.permute.xlu0 %1271
    %1273 = vrot.lane.b32.xlu0 %v888, 118
    %v1274 = vpop.permute.xlu0 %1273
    %1275 = vrot.lane.b32.xlu0 %v889, 118
    %v1276 = vpop.permute.xlu0 %1275
    %1277 = vrot.lane.b32.xlu0 %v890, 118
    %v1278 = vpop.permute.xlu0 %1277
    %1279 = vrot.lane.b32.xlu0 %v891, 118
    %v1280 = vpop.permute.xlu0 %1279
    %1281 = vrot.lane.b32.xlu0 %v892, 118
    %v1282 = vpop.permute.xlu0 %1281
    %1283 = vrot.lane.b32.xlu0 %v893, 118
    %v1284 = vpop.permute.xlu0 %1283
    %1285 = vrot.lane.b32.xlu0 %v894, 118
    %v1286 = vpop.permute.xlu0 %1285
    %v1295 = vadd.f32 %v1255, %v1272
    %v1296 = vadd.f32 %v1256, %v1274
    %v1297 = vadd.f32 %v1257, %v1276
    %v1298 = vadd.f32 %v1258, %v1278
    %v1299 = vadd.f32 %v1259, %v1280
    %v1300 = vadd.f32 %v1260, %v1282
    %v1301 = vadd.f32 %v1261, %v1284
    %v1302 = vadd.f32 %v1262, %v1286
    %v1303 = vmul.f32 %v1295, 0.03931809
    %v1304 = vmul.f32 %v1296, 0.03931809
    %v1305 = vmul.f32 %v1299, 0.03931809
    %v1306 = vmul.f32 %v1300, 0.03931809
    %v1307 = vmul.f32 %v1295, 0.06166304
    %v1308 = vmul.f32 %v1296, 0.06166304
    %v1309 = vmul.f32 %v1297, 0.06166304
    %v1310 = vmul.f32 %v1299, 0.06166304
    %v1311 = vmul.f32 %v1300, 0.06166304
    %v1312 = vmul.f32 %v1301, 0.06166304
    %v1319 = vrot.slane %v1307, 1
    %v1320 = vrot.slane %v1308, 1
    %v1321 = vsel %vm140, %v1319, %v1320
    %v1322 = vrot.slane %v1309, 1
    %v1323 = vsel %vm140, %v1320, %v1322
    %v1324 = vrot.slane %v1310, 1
    %v1325 = vrot.slane %v1311, 1
    %v1326 = vsel %vm140, %v1324, %v1325
    %v1327 = vrot.slane %v1312, 1
    %v1328 = vsel %vm140, %v1325, %v1327
    %v1333 = vadd.f32 %v1303, %v1321
    %v1334 = vadd.f32 %v1304, %v1323
    %v1335 = vadd.f32 %v1305, %v1326
    %v1336 = vadd.f32 %v1306, %v1328
    %v1337 = vmul.f32 %v1295, 0.08750402
    %v1338 = vmul.f32 %v1296, 0.08750402
    %v1339 = vmul.f32 %v1297, 0.08750402
    %v1340 = vmul.f32 %v1299, 0.08750402
    %v1341 = vmul.f32 %v1300, 0.08750402
    %v1342 = vmul.f32 %v1301, 0.08750402
    %v1349 = vrot.slane %v1337, 2
    %v1350 = vrot.slane %v1338, 2
    %v1351 = vsel %vm169, %v1349, %v1350
    %v1352 = vrot.slane %v1339, 2
    %v1353 = vsel %vm169, %v1350, %v1352
    %v1354 = vrot.slane %v1340, 2
    %v1355 = vrot.slane %v1341, 2
    %v1356 = vsel %vm169, %v1354, %v1355
    %v1357 = vrot.slane %v1342, 2
    %v1358 = vsel %vm169, %v1355, %v1357
    %v1363 = vadd.f32 %v1333, %v1351
    %v1364 = vadd.f32 %v1334, %v1353
    %v1365 = vadd.f32 %v1335, %v1356
    %v1366 = vadd.f32 %v1336, %v1358
    %v1367 = vmul.f32 %v1295, 0.112357385
    %v1368 = vmul.f32 %v1296, 0.112357385
    %v1369 = vmul.f32 %v1297, 0.112357385
    %v1370 = vmul.f32 %v1299, 0.112357385
    %v1371 = vmul.f32 %v1300, 0.112357385
    %v1372 = vmul.f32 %v1301, 0.112357385
    %v1379 = vrot.slane %v1367, 3
    %v1380 = vrot.slane %v1368, 3
    %v1381 = vsel %vm717, %v1379, %v1380
    %v1382 = vrot.slane %v1369, 3
    %v1383 = vsel %vm717, %v1380, %v1382
    %v1384 = vrot.slane %v1370, 3
    %v1385 = vrot.slane %v1371, 3
    %v1386 = vsel %vm717, %v1384, %v1385
    %v1387 = vrot.slane %v1372, 3
    %v1388 = vsel %vm717, %v1385, %v1387
    %v1393 = vadd.f32 %v1363, %v1381
    %v1394 = vadd.f32 %v1364, %v1383
    %v1395 = vadd.f32 %v1365, %v1386
    %v1396 = vadd.f32 %v1366, %v1388
    %v1397 = vmul.f32 %v1295, 0.13054065
    %v1398 = vmul.f32 %v1296, 0.13054065
    %v1399 = vmul.f32 %v1297, 0.13054065
    %v1400 = vmul.f32 %v1299, 0.13054065
    %v1401 = vmul.f32 %v1300, 0.13054065
    %v1402 = vmul.f32 %v1301, 0.13054065
    %v1409 = vrot.slane %v1397, 4
    %v1410 = vrot.slane %v1398, 4
    %v1411 = vsel %vm748, %v1409, %v1410
    %v1412 = vrot.slane %v1399, 4
    %v1413 = vsel %vm748, %v1410, %v1412
    %v1414 = vrot.slane %v1400, 4
    %v1415 = vrot.slane %v1401, 4
    %v1416 = vsel %vm748, %v1414, %v1415
    %v1417 = vrot.slane %v1402, 4
    %v1418 = vsel %vm748, %v1415, %v1417
    %v1423 = vadd.f32 %v1393, %v1411
    %v1424 = vadd.f32 %v1394, %v1413
    %v1425 = vadd.f32 %v1395, %v1416
    %v1426 = vadd.f32 %v1396, %v1418
    %v1427 = vmul.f32 %v1295, 0.13723361
    %v1428 = vmul.f32 %v1296, 0.13723361
    %v1429 = vmul.f32 %v1297, 0.13723361
    %v1430 = vmul.f32 %v1299, 0.13723361
    %v1431 = vmul.f32 %v1300, 0.13723361
    %v1432 = vmul.f32 %v1301, 0.13723361
    %v1439 = vrot.slane %v1427, 5
    %v1440 = vrot.slane %v1428, 5
    %v1441 = vsel %vm779, %v1439, %v1440
    %v1442 = vrot.slane %v1429, 5
    %v1443 = vsel %vm779, %v1440, %v1442
    %v1444 = vrot.slane %v1430, 5
    %v1445 = vrot.slane %v1431, 5
    %v1446 = vsel %vm779, %v1444, %v1445
    %v1447 = vrot.slane %v1432, 5
    %v1448 = vsel %vm779, %v1445, %v1447
    %v1453 = vadd.f32 %v1423, %v1441
    %v1454 = vadd.f32 %v1424, %v1443
    %v1455 = vadd.f32 %v1425, %v1446
    %v1456 = vadd.f32 %v1426, %v1448
    %v1457 = vrot.slane %v1397, 6
    %v1458 = vrot.slane %v1398, 6
    %v1459 = vsel %vm798, %v1457, %v1458
    %v1460 = vrot.slane %v1399, 6
    %v1461 = vsel %vm798, %v1458, %v1460
    %v1462 = vrot.slane %v1400, 6
    %v1463 = vrot.slane %v1401, 6
    %v1464 = vsel %vm798, %v1462, %v1463
    %v1465 = vrot.slane %v1402, 6
    %v1466 = vsel %vm798, %v1463, %v1465
    %v1471 = vadd.f32 %v1453, %v1459
    %v1472 = vadd.f32 %v1454, %v1461
    %v1473 = vadd.f32 %v1455, %v1464
    %v1474 = vadd.f32 %v1456, %v1466
    %v1475 = vrot.slane %v1367, 7
    %v1476 = vrot.slane %v1368, 7
    %v1477 = vsel %vm817, %v1475, %v1476
    %v1478 = vrot.slane %v1369, 7
    %v1479 = vsel %vm817, %v1476, %v1478
    %v1480 = vrot.slane %v1370, 7
    %v1481 = vrot.slane %v1371, 7
    %v1482 = vsel %vm817, %v1480, %v1481
    %v1483 = vrot.slane %v1372, 7
    %v1484 = vsel %vm817, %v1481, %v1483
    %v1489 = vadd.f32 %v1471, %v1477
    %v1490 = vadd.f32 %v1472, %v1479
    %v1491 = vadd.f32 %v1473, %v1482
    %v1492 = vadd.f32 %v1474, %v1484
    %v1493 = vadd.f32 %v1489, %v1338
    %v1494 = vadd.f32 %v1490, %v1339
    %v1495 = vadd.f32 %v1491, %v1341
    %v1496 = vadd.f32 %v1492, %v1342
    %v1497 = vmul.f32 %v1298, 0.06166304
    %v1498 = vmul.f32 %v1302, 0.06166304
    %v1501 = vrot.slane %v1497, 1
    %v1502 = vsel %vm140, %v1322, %v1501
    %v1503 = vrot.slane %v1498, 1
    %v1504 = vsel %vm140, %v1327, %v1503
    %v1507 = vadd.f32 %v1493, %v1323
    %v1508 = vadd.f32 %v1494, %v1502
    %v1509 = vadd.f32 %v1495, %v1328
    %v1510 = vadd.f32 %v1496, %v1504
    %v1511 = vmul.f32 %v1297, 0.03931809
    %v1512 = vmul.f32 %v1298, 0.03931809
    %v1513 = vmul.f32 %v1301, 0.03931809
    %v1514 = vmul.f32 %v1302, 0.03931809
    %v1521 = vrot.slane %v1304, 2
    %v1522 = vrot.slane %v1511, 2
    %v1523 = vsel %vm169, %v1521, %v1522
    %v1524 = vrot.slane %v1512, 2
    %v1525 = vsel %vm169, %v1522, %v1524
    %v1526 = vrot.slane %v1306, 2
    %v1527 = vrot.slane %v1513, 2
    %v1528 = vsel %vm169, %v1526, %v1527
    %v1529 = vrot.slane %v1514, 2
    %v1530 = vsel %vm169, %v1527, %v1529
    %v1535 = vadd.f32 %v1507, %v1523
    %v1536 = vadd.f32 %v1508, %v1525
    %v1537 = vadd.f32 %v1509, %v1528
    %v1538 = vadd.f32 %v1510, %v1530
    %s1539 = scalar_lea.vmem [#allocation2], 48
    %1540 = vst.msk [vmem:[%s1539] sm:$0xff] %vm43, %v1535
    %1541 = vst.msk [vmem:[%s1539 + $0x8] sm:$0xff] %vm43, %v1536
    %1542 = vst.msk [vmem:[%s1539 + $0x50] sm:$0xff] %vm43, %v1537
    %1543 = vst.msk [vmem:[%s1539 + $0x58] sm:$0xff] %vm43, %v1538
    %v1544 = vmul.f32 %v9, 0.084258825
    %v1545 = vmul.f32 %v10, 0.084258825
    %v1546 = vmul.f32 %v11, 0.084258825
    %v1547 = vmul.f32 %v12, 0.084258825
    %v1548 = vmul.f32 %v13, 0.084258825
    %v1549 = vmul.f32 %v14, 0.084258825
    %v1550 = vmul.f32 %v15, 0.084258825
    %v1551 = vmul.f32 %v16, 0.084258825
    %v1552 = vmul.f32 %v9, 0.088137075
    %v1553 = vmul.f32 %v10, 0.088137075
    %v1554 = vmul.f32 %v11, 0.088137075
    %v1555 = vmul.f32 %v12, 0.088137075
    %v1556 = vmul.f32 %v13, 0.088137075
    %v1557 = vmul.f32 %v14, 0.088137075
    %v1558 = vmul.f32 %v15, 0.088137075
    %v1559 = vmul.f32 %v16, 0.088137075
    %1568 = vrot.lane.b32.xlu0 %v1552, 127
    %v1569 = vpop.permute.xlu0 %1568
    %1570 = vrot.lane.b32.xlu0 %v1553, 127
    %v1571 = vpop.permute.xlu0 %1570
    %1572 = vrot.lane.b32.xlu0 %v1554, 127
    %v1573 = vpop.permute.xlu0 %1572
    %1574 = vrot.lane.b32.xlu0 %v1555, 127
    %v1575 = vpop.permute.xlu0 %1574
    %1576 = vrot.lane.b32.xlu0 %v1556, 127
    %v1577 = vpop.permute.xlu0 %1576
    %1578 = vrot.lane.b32.xlu0 %v1557, 127
    %v1579 = vpop.permute.xlu0 %1578
    %1580 = vrot.lane.b32.xlu0 %v1558, 127
    %v1581 = vpop.permute.xlu0 %1580
    %1582 = vrot.lane.b32.xlu0 %v1559, 127
    %v1583 = vpop.permute.xlu0 %1582
    %v1592 = vadd.f32 %v1544, %v1569
    %v1593 = vadd.f32 %v1545, %v1571
    %v1594 = vadd.f32 %v1546, %v1573
    %v1595 = vadd.f32 %v1547, %v1575
    %v1596 = vadd.f32 %v1548, %v1577
    %v1597 = vadd.f32 %v1549, %v1579
    %v1598 = vadd.f32 %v1550, %v1581
    %v1599 = vadd.f32 %v1551, %v1583
    %v1600 = vmul.f32 %v9, 0.0912765
    %v1601 = vmul.f32 %v10, 0.0912765
    %v1602 = vmul.f32 %v11, 0.0912765
    %v1603 = vmul.f32 %v12, 0.0912765
    %v1604 = vmul.f32 %v13, 0.0912765
    %v1605 = vmul.f32 %v14, 0.0912765
    %v1606 = vmul.f32 %v15, 0.0912765
    %v1607 = vmul.f32 %v16, 0.0912765
    %1616 = vrot.lane.b32.xlu0 %v1600, 126
    %v1617 = vpop.permute.xlu0 %1616
    %1618 = vrot.lane.b32.xlu0 %v1601, 126
    %v1619 = vpop.permute.xlu0 %1618
    %1620 = vrot.lane.b32.xlu0 %v1602, 126
    %v1621 = vpop.permute.xlu0 %1620
    %1622 = vrot.lane.b32.xlu0 %v1603, 126
    %v1623 = vpop.permute.xlu0 %1622
    %1624 = vrot.lane.b32.xlu0 %v1604, 126
    %v1625 = vpop.permute.xlu0 %1624
    %1626 = vrot.lane.b32.xlu0 %v1605, 126
    %v1627 = vpop.permute.xlu0 %1626
    %1628 = vrot.lane.b32.xlu0 %v1606, 126
    %v1629 = vpop.permute.xlu0 %1628
    %1630 = vrot.lane.b32.xlu0 %v1607, 126
    %v1631 = vpop.permute.xlu0 %1630
    %v1640 = vadd.f32 %v1592, %v1617
    %v1641 = vadd.f32 %v1593, %v1619
    %v1642 = vadd.f32 %v1594, %v1621
    %v1643 = vadd.f32 %v1595, %v1623
    %v1644 = vadd.f32 %v1596, %v1625
    %v1645 = vadd.f32 %v1597, %v1627
    %v1646 = vadd.f32 %v1598, %v1629
    %v1647 = vadd.f32 %v1599, %v1631
    %v1648 = vmul.f32 %v9, 0.09358717
    %v1649 = vmul.f32 %v10, 0.09358717
    %v1650 = vmul.f32 %v11, 0.09358717
    %v1651 = vmul.f32 %v12, 0.09358717
    %v1652 = vmul.f32 %v13, 0.09358717
    %v1653 = vmul.f32 %v14, 0.09358717
    %v1654 = vmul.f32 %v15, 0.09358717
    %v1655 = vmul.f32 %v16, 0.09358717
    %1664 = vrot.lane.b32.xlu0 %v1648, 125
    %v1665 = vpop.permute.xlu0 %1664
    %1666 = vrot.lane.b32.xlu0 %v1649, 125
    %v1667 = vpop.permute.xlu0 %1666
    %1668 = vrot.lane.b32.xlu0 %v1650, 125
    %v1669 = vpop.permute.xlu0 %1668
    %1670 = vrot.lane.b32.xlu0 %v1651, 125
    %v1671 = vpop.permute.xlu0 %1670
    %1672 = vrot.lane.b32.xlu0 %v1652, 125
    %v1673 = vpop.permute.xlu0 %1672
    %1674 = vrot.lane.b32.xlu0 %v1653, 125
    %v1675 = vpop.permute.xlu0 %1674
    %1676 = vrot.lane.b32.xlu0 %v1654, 125
    %v1677 = vpop.permute.xlu0 %1676
    %1678 = vrot.lane.b32.xlu0 %v1655, 125
    %v1679 = vpop.permute.xlu0 %1678
    %v1688 = vadd.f32 %v1640, %v1665
    %v1689 = vadd.f32 %v1641, %v1667
    %v1690 = vadd.f32 %v1642, %v1669
    %v1691 = vadd.f32 %v1643, %v1671
    %v1692 = vadd.f32 %v1644, %v1673
    %v1693 = vadd.f32 %v1645, %v1675
    %v1694 = vadd.f32 %v1646, %v1677
    %v1695 = vadd.f32 %v1647, %v1679
    %v1696 = vmul.f32 %v9, 0.095001556
    %v1697 = vmul.f32 %v10, 0.095001556
    %v1698 = vmul.f32 %v11, 0.095001556
    %v1699 = vmul.f32 %v12, 0.095001556
    %v1700 = vmul.f32 %v13, 0.095001556
    %v1701 = vmul.f32 %v14, 0.095001556
    %v1702 = vmul.f32 %v15, 0.095001556
    %v1703 = vmul.f32 %v16, 0.095001556
    %1712 = vrot.lane.b32.xlu0 %v1696, 124
    %v1713 = vpop.permute.xlu0 %1712
    %1714 = vrot.lane.b32.xlu0 %v1697, 124
    %v1715 = vpop.permute.xlu0 %1714
    %1716 = vrot.lane.b32.xlu0 %v1698, 124
    %v1717 = vpop.permute.xlu0 %1716
    %1718 = vrot.lane.b32.xlu0 %v1699, 124
    %v1719 = vpop.permute.xlu0 %1718
    %1720 = vrot.lane.b32.xlu0 %v1700, 124
    %v1721 = vpop.permute.xlu0 %1720
    %1722 = vrot.lane.b32.xlu0 %v1701, 124
    %v1723 = vpop.permute.xlu0 %1722
    %1724 = vrot.lane.b32.xlu0 %v1702, 124
    %v1725 = vpop.permute.xlu0 %1724
    %1726 = vrot.lane.b32.xlu0 %v1703, 124
    %v1727 = vpop.permute.xlu0 %1726
    %v1736 = vadd.f32 %v1688, %v1713
    %v1737 = vadd.f32 %v1689, %v1715
    %v1738 = vadd.f32 %v1690, %v1717
    %v1739 = vadd.f32 %v1691, %v1719
    %v1740 = vadd.f32 %v1692, %v1721
    %v1741 = vadd.f32 %v1693, %v1723
    %v1742 = vadd.f32 %v1694, %v1725
    %v1743 = vadd.f32 %v1695, %v1727
    %v1744 = vmul.f32 %v9, 0.09547775
    %v1745 = vmul.f32 %v10, 0.09547775
    %v1746 = vmul.f32 %v11, 0.09547775
    %v1747 = vmul.f32 %v12, 0.09547775
    %v1748 = vmul.f32 %v13, 0.09547775
    %v1749 = vmul.f32 %v14, 0.09547775
    %v1750 = vmul.f32 %v15, 0.09547775
    %v1751 = vmul.f32 %v16, 0.09547775
    %1760 = vrot.lane.b32.xlu0 %v1744, 123
    %v1761 = vpop.permute.xlu0 %1760
    %1762 = vrot.lane.b32.xlu0 %v1745, 123
    %v1763 = vpop.permute.xlu0 %1762
    %1764 = vrot.lane.b32.xlu0 %v1746, 123
    %v1765 = vpop.permute.xlu0 %1764
    %1766 = vrot.lane.b32.xlu0 %v1747, 123
    %v1767 = vpop.permute.xlu0 %1766
    %1768 = vrot.lane.b32.xlu0 %v1748, 123
    %v1769 = vpop.permute.xlu0 %1768
    %1770 = vrot.lane.b32.xlu0 %v1749, 123
    %v1771 = vpop.permute.xlu0 %1770
    %1772 = vrot.lane.b32.xlu0 %v1750, 123
    %v1773 = vpop.permute.xlu0 %1772
    %1774 = vrot.lane.b32.xlu0 %v1751, 123
    %v1775 = vpop.permute.xlu0 %1774
    %v1784 = vadd.f32 %v1736, %v1761
    %v1785 = vadd.f32 %v1737, %v1763
    %v1786 = vadd.f32 %v1738, %v1765
    %v1787 = vadd.f32 %v1739, %v1767
    %v1788 = vadd.f32 %v1740, %v1769
    %v1789 = vadd.f32 %v1741, %v1771
    %v1790 = vadd.f32 %v1742, %v1773
    %v1791 = vadd.f32 %v1743, %v1775
    %1792 = vrot.lane.b32.xlu0 %v1696, 122
    %v1793 = vpop.permute.xlu0 %1792
    %1794 = vrot.lane.b32.xlu0 %v1697, 122
    %v1795 = vpop.permute.xlu0 %1794
    %1796 = vrot.lane.b32.xlu0 %v1698, 122
    %v1797 = vpop.permute.xlu0 %1796
    %1798 = vrot.lane.b32.xlu0 %v1699, 122
    %v1799 = vpop.permute.xlu0 %1798
    %1800 = vrot.lane.b32.xlu0 %v1700, 122
    %v1801 = vpop.permute.xlu0 %1800
    %1802 = vrot.lane.b32.xlu0 %v1701, 122
    %v1803 = vpop.permute.xlu0 %1802
    %1804 = vrot.lane.b32.xlu0 %v1702, 122
    %v1805 = vpop.permute.xlu0 %1804
    %1806 = vrot.lane.b32.xlu0 %v1703, 122
    %v1807 = vpop.permute.xlu0 %1806
    %v1816 = vadd.f32 %v1784, %v1793
    %v1817 = vadd.f32 %v1785, %v1795
    %v1818 = vadd.f32 %v1786, %v1797
    %v1819 = vadd.f32 %v1787, %v1799
    %v1820 = vadd.f32 %v1788, %v1801
    %v1821 = vadd.f32 %v1789, %v1803
    %v1822 = vadd.f32 %v1790, %v1805
    %v1823 = vadd.f32 %v1791, %v1807
    %1824 = vrot.lane.b32.xlu0 %v1648, 121
    %v1825 = vpop.permute.xlu0 %1824
    %1826 = vrot.lane.b32.xlu0 %v1649, 121
    %v1827 = vpop.permute.xlu0 %1826
    %1828 = vrot.lane.b32.xlu0 %v1650, 121
    %v1829 = vpop.permute.xlu0 %1828
    %1830 = vrot.lane.b32.xlu0 %v1651, 121
    %v1831 = vpop.permute.xlu0 %1830
    %1832 = vrot.lane.b32.xlu0 %v1652, 121
    %v1833 = vpop.permute.xlu0 %1832
    %1834 = vrot.lane.b32.xlu0 %v1653, 121
    %v1835 = vpop.permute.xlu0 %1834
    %1836 = vrot.lane.b32.xlu0 %v1654, 121
    %v1837 = vpop.permute.xlu0 %1836
    %1838 = vrot.lane.b32.xlu0 %v1655, 121
    %v1839 = vpop.permute.xlu0 %1838
    %v1848 = vadd.f32 %v1816, %v1825
    %v1849 = vadd.f32 %v1817, %v1827
    %v1850 = vadd.f32 %v1818, %v1829
    %v1851 = vadd.f32 %v1819, %v1831
    %v1852 = vadd.f32 %v1820, %v1833
    %v1853 = vadd.f32 %v1821, %v1835
    %v1854 = vadd.f32 %v1822, %v1837
    %v1855 = vadd.f32 %v1823, %v1839
    %1856 = vrot.lane.b32.xlu0 %v1600, 120
    %v1857 = vpop.permute.xlu0 %1856
    %1858 = vrot.lane.b32.xlu0 %v1601, 120
    %v1859 = vpop.permute.xlu0 %1858
    %1860 = vrot.lane.b32.xlu0 %v1602, 120
    %v1861 = vpop.permute.xlu0 %1860
    %1862 = vrot.lane.b32.xlu0 %v1603, 120
    %v1863 = vpop.permute.xlu0 %1862
    %1864 = vrot.lane.b32.xlu0 %v1604, 120
    %v1865 = vpop.permute.xlu0 %1864
    %1866 = vrot.lane.b32.xlu0 %v1605, 120
    %v1867 = vpop.permute.xlu0 %1866
    %1868 = vrot.lane.b32.xlu0 %v1606, 120
    %v1869 = vpop.permute.xlu0 %1868
    %1870 = vrot.lane.b32.xlu0 %v1607, 120
    %v1871 = vpop.permute.xlu0 %1870
    %v1880 = vadd.f32 %v1848, %v1857
    %v1881 = vadd.f32 %v1849, %v1859
    %v1882 = vadd.f32 %v1850, %v1861
    %v1883 = vadd.f32 %v1851, %v1863
    %v1884 = vadd.f32 %v1852, %v1865
    %v1885 = vadd.f32 %v1853, %v1867
    %v1886 = vadd.f32 %v1854, %v1869
    %v1887 = vadd.f32 %v1855, %v1871
    %1888 = vrot.lane.b32.xlu0 %v1552, 119
    %v1889 = vpop.permute.xlu0 %1888
    %1890 = vrot.lane.b32.xlu0 %v1553, 119
    %v1891 = vpop.permute.xlu0 %1890
    %1892 = vrot.lane.b32.xlu0 %v1554, 119
    %v1893 = vpop.permute.xlu0 %1892
    %1894 = vrot.lane.b32.xlu0 %v1555, 119
    %v1895 = vpop.permute.xlu0 %1894
    %1896 = vrot.lane.b32.xlu0 %v1556, 119
    %v1897 = vpop.permute.xlu0 %1896
    %1898 = vrot.lane.b32.xlu0 %v1557, 119
    %v1899 = vpop.permute.xlu0 %1898
    %1900 = vrot.lane.b32.xlu0 %v1558, 119
    %v1901 = vpop.permute.xlu0 %1900
    %1902 = vrot.lane.b32.xlu0 %v1559, 119
    %v1903 = vpop.permute.xlu0 %1902
    %v1912 = vadd.f32 %v1880, %v1889
    %v1913 = vadd.f32 %v1881, %v1891
    %v1914 = vadd.f32 %v1882, %v1893
    %v1915 = vadd.f32 %v1883, %v1895
    %v1916 = vadd.f32 %v1884, %v1897
    %v1917 = vadd.f32 %v1885, %v1899
    %v1918 = vadd.f32 %v1886, %v1901
    %v1919 = vadd.f32 %v1887, %v1903
    %1928 = vrot.lane.b32.xlu0 %v1544, 118
    %v1929 = vpop.permute.xlu0 %1928
    %1930 = vrot.lane.b32.xlu0 %v1545, 118
    %v1931 = vpop.permute.xlu0 %1930
    %1932 = vrot.lane.b32.xlu0 %v1546, 118
    %v1933 = vpop.permute.xlu0 %1932
    %1934 = vrot.lane.b32.xlu0 %v1547, 118
    %v1935 = vpop.permute.xlu0 %1934
    %1936 = vrot.lane.b32.xlu0 %v1548, 118
    %v1937 = vpop.permute.xlu0 %1936
    %1938 = vrot.lane.b32.xlu0 %v1549, 118
    %v1939 = vpop.permute.xlu0 %1938
    %1940 = vrot.lane.b32.xlu0 %v1550, 118
    %v1941 = vpop.permute.xlu0 %1940
    %1942 = vrot.lane.b32.xlu0 %v1551, 118
    %v1943 = vpop.permute.xlu0 %1942
    %v1952 = vadd.f32 %v1912, %v1929
    %v1953 = vadd.f32 %v1913, %v1931
    %v1954 = vadd.f32 %v1914, %v1933
    %v1955 = vadd.f32 %v1915, %v1935
    %v1956 = vadd.f32 %v1916, %v1937
    %v1957 = vadd.f32 %v1917, %v1939
    %v1958 = vadd.f32 %v1918, %v1941
    %v1959 = vadd.f32 %v1919, %v1943
    %v1960 = vmul.f32 %v1952, 0.084258825
    %v1961 = vmul.f32 %v1953, 0.084258825
    %v1962 = vmul.f32 %v1956, 0.084258825
    %v1963 = vmul.f32 %v1957, 0.084258825
    %v1964 = vmul.f32 %v1952, 0.088137075
    %v1965 = vmul.f32 %v1953, 0.088137075
    %v1966 = vmul.f32 %v1954, 0.088137075
    %v1967 = vmul.f32 %v1956, 0.088137075
    %v1968 = vmul.f32 %v1957, 0.088137075
    %v1969 = vmul.f32 %v1958, 0.088137075
    %v1976 = vrot.slane %v1964, 1
    %v1977 = vrot.slane %v1965, 1
    %v1978 = vsel %vm140, %v1976, %v1977
    %v1979 = vrot.slane %v1966, 1
    %v1980 = vsel %vm140, %v1977, %v1979
    %v1981 = vrot.slane %v1967, 1
    %v1982 = vrot.slane %v1968, 1
    %v1983 = vsel %vm140, %v1981, %v1982
    %v1984 = vrot.slane %v1969, 1
    %v1985 = vsel %vm140, %v1982, %v1984
    %v1990 = vadd.f32 %v1960, %v1978
    %v1991 = vadd.f32 %v1961, %v1980
    %v1992 = vadd.f32 %v1962, %v1983
    %v1993 = vadd.f32 %v1963, %v1985
    %v1994 = vmul.f32 %v1952, 0.0912765
    %v1995 = vmul.f32 %v1953, 0.0912765
    %v1996 = vmul.f32 %v1954, 0.0912765
    %v1997 = vmul.f32 %v1956, 0.0912765
    %v1998 = vmul.f32 %v1957, 0.0912765
    %v1999 = vmul.f32 %v1958, 0.0912765
    %v2006 = vrot.slane %v1994, 2
    %v2007 = vrot.slane %v1995, 2
    %v2008 = vsel %vm169, %v2006, %v2007
    %v2009 = vrot.slane %v1996, 2
    %v2010 = vsel %vm169, %v2007, %v2009
    %v2011 = vrot.slane %v1997, 2
    %v2012 = vrot.slane %v1998, 2
    %v2013 = vsel %vm169, %v2011, %v2012
    %v2014 = vrot.slane %v1999, 2
    %v2015 = vsel %vm169, %v2012, %v2014
    %v2020 = vadd.f32 %v1990, %v2008
    %v2021 = vadd.f32 %v1991, %v2010
    %v2022 = vadd.f32 %v1992, %v2013
    %v2023 = vadd.f32 %v1993, %v2015
    %v2024 = vmul.f32 %v1952, 0.09358717
    %v2025 = vmul.f32 %v1953, 0.09358717
    %v2026 = vmul.f32 %v1954, 0.09358717
    %v2027 = vmul.f32 %v1956, 0.09358717
    %v2028 = vmul.f32 %v1957, 0.09358717
    %v2029 = vmul.f32 %v1958, 0.09358717
    %v2036 = vrot.slane %v2024, 3
    %v2037 = vrot.slane %v2025, 3
    %v2038 = vsel %vm717, %v2036, %v2037
    %v2039 = vrot.slane %v2026, 3
    %v2040 = vsel %vm717, %v2037, %v2039
    %v2041 = vrot.slane %v2027, 3
    %v2042 = vrot.slane %v2028, 3
    %v2043 = vsel %vm717, %v2041, %v2042
    %v2044 = vrot.slane %v2029, 3
    %v2045 = vsel %vm717, %v2042, %v2044
    %v2050 = vadd.f32 %v2020, %v2038
    %v2051 = vadd.f32 %v2021, %v2040
    %v2052 = vadd.f32 %v2022, %v2043
    %v2053 = vadd.f32 %v2023, %v2045
    %v2054 = vmul.f32 %v1952, 0.095001556
    %v2055 = vmul.f32 %v1953, 0.095001556
    %v2056 = vmul.f32 %v1954, 0.095001556
    %v2057 = vmul.f32 %v1956, 0.095001556
    %v2058 = vmul.f32 %v1957, 0.095001556
    %v2059 = vmul.f32 %v1958, 0.095001556
    %v2066 = vrot.slane %v2054, 4
    %v2067 = vrot.slane %v2055, 4
    %v2068 = vsel %vm748, %v2066, %v2067
    %v2069 = vrot.slane %v2056, 4
    %v2070 = vsel %vm748, %v2067, %v2069
    %v2071 = vrot.slane %v2057, 4
    %v2072 = vrot.slane %v2058, 4
    %v2073 = vsel %vm748, %v2071, %v2072
    %v2074 = vrot.slane %v2059, 4
    %v2075 = vsel %vm748, %v2072, %v2074
    %v2080 = vadd.f32 %v2050, %v2068
    %v2081 = vadd.f32 %v2051, %v2070
    %v2082 = vadd.f32 %v2052, %v2073
    %v2083 = vadd.f32 %v2053, %v2075
    %v2084 = vmul.f32 %v1952, 0.09547775
    %v2085 = vmul.f32 %v1953, 0.09547775
    %v2086 = vmul.f32 %v1954, 0.09547775
    %v2087 = vmul.f32 %v1956, 0.09547775
    %v2088 = vmul.f32 %v1957, 0.09547775
    %v2089 = vmul.f32 %v1958, 0.09547775
    %v2096 = vrot.slane %v2084, 5
    %v2097 = vrot.slane %v2085, 5
    %v2098 = vsel %vm779, %v2096, %v2097
    %v2099 = vrot.slane %v2086, 5
    %v2100 = vsel %vm779, %v2097, %v2099
    %v2101 = vrot.slane %v2087, 5
    %v2102 = vrot.slane %v2088, 5
    %v2103 = vsel %vm779, %v2101, %v2102
    %v2104 = vrot.slane %v2089, 5
    %v2105 = vsel %vm779, %v2102, %v2104
    %v2110 = vadd.f32 %v2080, %v2098
    %v2111 = vadd.f32 %v2081, %v2100
    %v2112 = vadd.f32 %v2082, %v2103
    %v2113 = vadd.f32 %v2083, %v2105
    %v2114 = vrot.slane %v2054, 6
    %v2115 = vrot.slane %v2055, 6
    %v2116 = vsel %vm798, %v2114, %v2115
    %v2117 = vrot.slane %v2056, 6
    %v2118 = vsel %vm798, %v2115, %v2117
    %v2119 = vrot.slane %v2057, 6
    %v2120 = vrot.slane %v2058, 6
    %v2121 = vsel %vm798, %v2119, %v2120
    %v2122 = vrot.slane %v2059, 6
    %v2123 = vsel %vm798, %v2120, %v2122
    %v2128 = vadd.f32 %v2110, %v2116
    %v2129 = vadd.f32 %v2111, %v2118
    %v2130 = vadd.f32 %v2112, %v2121
    %v2131 = vadd.f32 %v2113, %v2123
    %v2132 = vrot.slane %v2024, 7
    %v2133 = vrot.slane %v2025, 7
    %v2134 = vsel %vm817, %v2132, %v2133
    %v2135 = vrot.slane %v2026, 7
    %v2136 = vsel %vm817, %v2133, %v2135
    %v2137 = vrot.slane %v2027, 7
    %v2138 = vrot.slane %v2028, 7
    %v2139 = vsel %vm817, %v2137, %v2138
    %v2140 = vrot.slane %v2029, 7
    %v2141 = vsel %vm817, %v2138, %v2140
    %v2146 = vadd.f32 %v2128, %v2134
    %v2147 = vadd.f32 %v2129, %v2136
    %v2148 = vadd.f32 %v2130, %v2139
    %v2149 = vadd.f32 %v2131, %v2141
    %v2150 = vadd.f32 %v2146, %v1995
    %v2151 = vadd.f32 %v2147, %v1996
    %v2152 = vadd.f32 %v2148, %v1998
    %v2153 = vadd.f32 %v2149, %v1999
    %v2154 = vmul.f32 %v1955, 0.088137075
    %v2155 = vmul.f32 %v1959, 0.088137075
    %v2158 = vrot.slane %v2154, 1
    %v2159 = vsel %vm140, %v1979, %v2158
    %v2160 = vrot.slane %v2155, 1
    %v2161 = vsel %vm140, %v1984, %v2160
    %v2164 = vadd.f32 %v2150, %v1980
    %v2165 = vadd.f32 %v2151, %v2159
    %v2166 = vadd.f32 %v2152, %v1985
    %v2167 = vadd.f32 %v2153, %v2161
    %v2168 = vmul.f32 %v1954, 0.084258825
    %v2169 = vmul.f32 %v1955, 0.084258825
    %v2170 = vmul.f32 %v1958, 0.084258825
    %v2171 = vmul.f32 %v1959, 0.084258825
    %v2178 = vrot.slane %v1961, 2
    %v2179 = vrot.slane %v2168, 2
    %v2180 = vsel %vm169, %v2178, %v2179
    %v2181 = vrot.slane %v2169, 2
    %v2182 = vsel %vm169, %v2179, %v2181
    %v2183 = vrot.slane %v1963, 2
    %v2184 = vrot.slane %v2170, 2
    %v2185 = vsel %vm169, %v2183, %v2184
    %v2186 = vrot.slane %v2171, 2
    %v2187 = vsel %vm169, %v2184, %v2186
    %v2192 = vadd.f32 %v2164, %v2180
    %v2193 = vadd.f32 %v2165, %v2182
    %v2194 = vadd.f32 %v2166, %v2185
    %v2195 = vadd.f32 %v2167, %v2187
    %s2196 = scalar_lea.vmem [#allocation2], 64
    %2197 = vst.msk [vmem:[%s2196] sm:$0xff] %vm43, %v2192
    %2198 = vst.msk [vmem:[%s2196 + $0x8] sm:$0xff] %vm43, %v2193
    %2199 = vst.msk [vmem:[%s2196 + $0x50] sm:$0xff] %vm43, %v2194
    %2200 = vst.msk [vmem:[%s2196 + $0x58] sm:$0xff] %vm43, %v2195
    // Predicated region
    $region6: #{tpu_custom_call.1} parent=1 // pred_check
      _
    $region7: #{tpu_custom_call.1} parent=1 // pred_check_branch
      %2202 = sbr.rel (0) target = $region9
    $region8: #{tpu_custom_call.1} parent=1 // pred_region
      %s2204 = ssub.s32 2560, 2560
      %2205 = vsyncadd [#allocation3], %s2204
      %s2206 = sshll.u32 [#allocation2], 4
      %s2207 = int_to_ptr.vmem [resolvable:$true] %s2206
      %2212 = dma.vmem_to_hbm [thread:$0]  %s2207, 2560, %s1, [#allocation3], 128, 128, 8
    $region9: #{tpu_custom_call.1} parent=1 // pred_fallthru
      _
    // Predicated region
    $region10: #{tpu_custom_call.1} parent=1 // pred_check
      _
    $region11: #{tpu_custom_call.1} parent=1 // pred_check_branch
      %2214 = sbr.rel (0) target = $region13
    $region12: #{tpu_custom_call.1} parent=1 // pred_region
      %2215 = dma.done [#allocation3], 2560
    $region13: #{tpu_custom_call.1} parent=1 // pred_fallthru
      _
    %2216 = vsyncpa [#allocation3], 1

</llo_original>
